<compile_context>
chip_gen: v7x
topology: tpu7x:2x2x1
jax: 0.10.0
libtpu: 0.0.40
codegen_flags: <defaults>
</compile_context>

<pallas_src>
import math

import jax
import jax.numpy as jnp
from jax.experimental import pallas as pl
from jax.experimental.pallas import tpu as pltpu


_BN_EPS = 1e-5


def _dcgan_d_kernel(xg_ref, w1b_ref, w2c_ref, gamma_ref, beta_ref, w3_ref,
                    o_ref):
    """Fused DCGAN-discriminator forward.

    xg_ref   : (B*16, 256) bf16  im2col patches, row = (sample, conv2 out pos),
                                 col = (conv2 tap k, conv1 tap t); rows for
                                 conv2's zero padding are all-zero.
    w1b_ref  : (256, 512)  bf16  tap-block-diagonal conv1 weights
                                 (block k maps cols k*16+t -> k*32+cin).
    w2c_ref  : (512, 64)   bf16  conv2 weights, row = (k, cin), col = cout.
    gamma_ref, beta_ref : (1, 64) f32  BatchNorm affine params.
    w3_ref   : (16, 64)    f32   conv3 weights, row = spatial tap q, col = cin.
    o_ref    : (B, 1)      f32   sigmoid score per sample.
    """
    B = o_ref.shape[0]

    # ---- conv1 (k4,s2,p0, no bias) + LeakyReLU(0.2) -----------------------
    # One (B*16, 256) @ (256, 512) bf16 matmul, f32 accumulation.  Output
    # lanes are already (conv2 tap, cin)-ordered thanks to the block-diagonal
    # weight layout.  All-zero rows (conv2 padding) stay exactly 0 through the
    # matmul and the LeakyReLU, matching zero padding applied after conv1.
    h = jnp.dot(xg_ref[...], w1b_ref[...],
                preferred_element_type=jnp.float32)            # (B*16, 512)
    h = jnp.where(h > 0, h, 0.2 * h)

    # ---- conv2 (k4,s2,p1, no bias): ONE fused tap matmul, K = 16*32 -------
    h2 = jnp.dot(h.astype(jnp.bfloat16), w2c_ref[...],
                 preferred_element_type=jnp.float32)           # (B*16, 64)

    # ---- BatchNorm2d(64), training-mode batch stats, single pass ----------
    mean = jnp.mean(h2, axis=0, keepdims=True)                 # (1, 64)
    meansq = jnp.mean(h2 * h2, axis=0, keepdims=True)
    var = meansq - mean * mean                                 # biased var
    scale = gamma_ref[...] * jax.lax.rsqrt(var + _BN_EPS)
    shift = beta_ref[...] - mean * scale
    h2 = h2 * scale + shift
    h2 = jnp.where(h2 > 0, h2, 0.1 * h2)                       # LeakyReLU(0.1)

    # ---- conv3 (k4,s1,p0, 64 -> 1): full per-sample contraction + sigmoid -
    h2r = h2.reshape(B, 16, 64)                                # free split
    t = jnp.sum(h2r * w3_ref[...][None, :, :], axis=-1)        # (B, 16)
    logit = jnp.sum(t, axis=-1, keepdims=True)                 # (B, 1)
    o_ref[...] = jax.nn.sigmoid(logit)


# --------------------------- host-side plumbing ---------------------------

def _im2col_conv12(x):
    """(B,1,H,W) -> (B*16, 256) patches.

    Row = (sample, conv2 output position q), col = (conv2 tap k, conv1 tap t).
    This folds conv2's pad=1 / stride=2 spatial gather into the input layout
    (pure plumbing, ~4x duplication of conv1 patches); conv2-padding rows are
    all-zero so conv1/LeakyReLU produce exact zeros there.
    """
    B, _, H, W = x.shape
    oh1 = (H - 4) // 2 + 1                      # conv1 output size (8)
    oh2 = (oh1 + 2 - 4) // 2 + 1                # conv2 output size (4)
    img = x[:, 0]

    # conv1 patches, position-indexed: (B, oh1, oh1, 16), t = ky*4+kx
    cols = []
    for ky in range(4):
        for kx in range(4):
            cols.append(img[:, ky:ky + 2 * oh1:2, kx:kx + 2 * oh1:2])
    patches = jnp.stack(cols, axis=-1)

    # conv2 gather (pad=1, stride=2): pick the patch feeding each (q, k)
    pad = jnp.pad(patches, ((0, 0), (1, 1), (1, 1), (0, 0)))
    blocks = []
    for ky in range(4):
        for kx in range(4):
            blocks.append(pad[:, ky:ky + 2 * oh2:2, kx:kx + 2 * oh2:2, :])
    g = jnp.stack(blocks, axis=3)               # (B, oh2, oh2, 16, 16)
    return g.reshape(B * oh2 * oh2, 16 * 16)


def _repack_weights(params):
    """PyTorch OIHW conv weights -> matmul-friendly kernel layouts."""
    # conv1: (32,1,4,4) -> (16, 32), row t = ky*4+kx, col = cout
    w1_flat = jnp.transpose(params["w1"][:, 0, :, :], (1, 2, 0)).reshape(16, 32)
    # Tap-block-diagonal conv1 weights: (256, 512); block k maps the 16
    # conv1 taps of conv2-tap k to lanes k*32 .. k*32+31.
    w1_blk = jnp.zeros((256, 512), jnp.float32)
    for k in range(16):
        w1_blk = w1_blk.at[k * 16:(k + 1) * 16, k * 32:(k + 1) * 32].set(w1_flat)
    # conv2: (64,32,4,4) -> (512, 64), row = (k, cin), col = cout
    w2_cat = jnp.transpose(params["w2"], (2, 3, 1, 0)).reshape(16 * 32, 64)
    # conv3: (1,64,4,4) -> (16, 64), row = spatial tap q, col = cin
    w3_r = jnp.transpose(params["w3"][0], (1, 2, 0)).reshape(16, 64)
    gamma = params["gamma"].reshape(1, 64)
    beta = params["beta"].reshape(1, 64)
    return w1_blk, w2_cat, w3_r, gamma, beta


def _dcgan_netD_forward_impl(x, params):
    """x: (B, 1, 18, 18) float32.  Returns (B,) sigmoid scores."""
    B, C, H, W = x.shape
    assert C == 1 and H == W
    oh1 = (H - 4) // 2 + 1
    oh2 = (oh1 + 2 - 4) // 2 + 1
    # The final 4x4 valid conv must consume the whole map (scalar per sample).
    assert oh2 == 4, "dcgan_netD kernel expects an 18x18 input (4x4 pre-conv3 map)"

    w1_blk, w2_cat, w3_r, gamma, beta = _repack_weights(params)
    xg = _im2col_conv12(x)                                  # (B*16, 256)

    # bf16 MXU inputs, f32 accumulation inside the kernel.
    xg_bf = xg.astype(jnp.bfloat16)
    w1_bf = w1_blk.astype(jnp.bfloat16)
    w2_bf = w2_cat.astype(jnp.bfloat16)

    vmem = pl.BlockSpec(memory_space=pltpu.MemorySpace.VMEM)
    out2d = pl.pallas_call(
        _dcgan_d_kernel,
        out_shape=jax.ShapeDtypeStruct((B, 1), jnp.float32),
        in_specs=[vmem] * 6,
        out_specs=vmem,
    )(xg_bf, w1_bf, w2_bf, gamma, beta, w3_r)
    return out2d[:, 0]


# jit the whole wrapper: the im2col / weight-repack plumbing fuses into the
# trace and the repacked operands stay device-resident between calls.
dcgan_netD_forward = jax.jit(_dcgan_netD_forward_impl)


# ------------------------- params & pure-JAX reference ---------------------

def make_params(key):
    k1, k2, k3, k4, k5 = jax.random.split(key, 5)

    def u(k, shape, fan_in):
        b = 1.0 / math.sqrt(fan_in)
        return jax.random.uniform(k, shape, jnp.float32, -b, b)

    w1 = u(k1, (32, 1, 4, 4), 1 * 16)     # OIHW, like torch
    w2 = u(k2, (64, 32, 4, 4), 32 * 16)
    w3 = u(k3, (1, 64, 4, 4), 64 * 16)
    gamma = 1.0 + 0.1 * jax.random.normal(k4, (64,), jnp.float32)
    beta = 0.1 * jax.random.normal(k5, (64,), jnp.float32)
    return dict(w1=w1, w2=w2, w3=w3, gamma=gamma, beta=beta)


def _reference(x, params):
    dn = ("NCHW", "OIHW", "NCHW")
    prec = jax.lax.Precision.HIGHEST
    h = jax.lax.conv_general_dilated(x, params["w1"], (2, 2), "VALID",
                                     dimension_numbers=dn, precision=prec)
    h = jnp.where(h > 0, h, 0.2 * h)
    h = jax.lax.conv_general_dilated(h, params["w2"], (2, 2), ((1, 1), (1, 1)),
                                     dimension_numbers=dn, precision=prec)
    mean = jnp.mean(h, axis=(0, 2, 3), keepdims=True)        # training-mode BN
    var = jnp.mean((h - mean) ** 2, axis=(0, 2, 3), keepdims=True)
    h = (h - mean) / jnp.sqrt(var + _BN_EPS)
    h = h * params["gamma"].reshape(1, -1, 1, 1) + params["beta"].reshape(1, -1, 1, 1)
    h = jnp.where(h > 0, h, 0.1 * h)
    h = jax.lax.conv_general_dilated(h, params["w3"], (1, 1), "VALID",
                                     dimension_numbers=dn, precision=prec)
    return jax.nn.sigmoid(h).reshape(-1)                     # view(-1,1).squeeze(1)


if __name__ == "__main__":
    key = jax.random.PRNGKey(0)
    kx, kp = jax.random.split(key)

    B, H = 8, 18                         # 18x18 -> 8x8 -> 4x4 -> 1x1
    x = jax.random.normal(kx, (B, 1, H, H), jnp.float32)
    params = make_params(kp)

    out = dcgan_netD_forward(x, params)
    out = jax.block_until_ready(out)

    ref = _reference(x, params)
    assert out.shape == (B,)
    assert jnp.allclose(out, ref, atol=2e-3, rtol=2e-3), (
        f"max abs err = {jnp.max(jnp.abs(out - ref))}")

    print("KERNEL_OK")
</pallas_src>

<mosaic_0001>
module attributes {stable_mosaic.version = 11 : i64} {
  func.func @_dcgan_d_kernel(%arg0: memref<128x256xbf16, #tpu.memory_space<vmem>>, %arg1: memref<256x512xbf16, #tpu.memory_space<vmem>>, %arg2: memref<512x64xbf16, #tpu.memory_space<vmem>>, %arg3: memref<1x64xf32, #tpu.memory_space<vmem>>, %arg4: memref<1x64xf32, #tpu.memory_space<vmem>>, %arg5: memref<16x64xf32, #tpu.memory_space<vmem>>, %arg6: memref<8x1xf32, #tpu.memory_space<vmem>>) attributes {dimension_semantics = [], scalar_prefetch = 0 : i64, scratch_operands = 0 : i64, tpu.core_type = #tpu.core_type<tc>} {
    %c0 = arith.constant 0 : index
    %c0_0 = arith.constant 0 : index
    %0 = vector.load %arg0[%c0, %c0_0] : memref<128x256xbf16, #tpu.memory_space<vmem>>, vector<128x256xbf16>
    %c0_1 = arith.constant 0 : index
    %c0_2 = arith.constant 0 : index
    %1 = vector.load %arg1[%c0_1, %c0_2] : memref<256x512xbf16, #tpu.memory_space<vmem>>, vector<256x512xbf16>
    %cst = arith.constant dense<0.000000e+00> : vector<128x512xf32>
    %2 = tpu.matmul %0, %1, %cst {dimension_numbers = #tpu.dot_dimension_numbers<[1], [0], [0], [1], [0, 0, 1, 1], [], []>} : vector<128x256xbf16>, vector<256x512xbf16>, vector<128x512xf32> -> vector<128x512xf32>
    %cst_3 = arith.constant 0.000000e+00 : f32
    %3 = vector.broadcast %cst_3 : f32 to vector<128x512xf32>
    %4 = arith.cmpf ogt, %2, %3 : vector<128x512xf32>
    %cst_4 = arith.constant 2.000000e-01 : f32
    %5 = vector.broadcast %cst_4 : f32 to vector<128x512xf32>
    %6 = arith.mulf %5, %2 : vector<128x512xf32>
    %7 = arith.select %4, %2, %6 : vector<128x512xi1>, vector<128x512xf32>
    %8 = arith.truncf %7 : vector<128x512xf32> to vector<128x512xbf16>
    %c0_5 = arith.constant 0 : index
    %c0_6 = arith.constant 0 : index
    %9 = vector.load %arg2[%c0_5, %c0_6] : memref<512x64xbf16, #tpu.memory_space<vmem>>, vector<512x64xbf16>
    %cst_7 = arith.constant dense<0.000000e+00> : vector<128x64xf32>
    %10 = tpu.matmul %8, %9, %cst_7 {dimension_numbers = #tpu.dot_dimension_numbers<[1], [0], [0], [1], [0, 0, 1, 1], [], []>} : vector<128x512xbf16>, vector<512x64xbf16>, vector<128x64xf32> -> vector<128x64xf32>
    %cst_8 = arith.constant dense<0.000000e+00> : vector<64xf32>
    %11 = vector.multi_reduction <add>, %10, %cst_8 [0] : vector<128x64xf32> to vector<64xf32>
    %12 = vector.shape_cast %11 : vector<64xf32> to vector<1x64xf32>
    %cst_9 = arith.constant 1.280000e+02 : f32
    %13 = vector.broadcast %cst_9 : f32 to vector<1x64xf32>
    %14 = arith.divf %12, %13 : vector<1x64xf32>
    %15 = arith.mulf %10, %10 : vector<128x64xf32>
    %cst_10 = arith.constant dense<0.000000e+00> : vector<64xf32>
    %16 = vector.multi_reduction <add>, %15, %cst_10 [0] : vector<128x64xf32> to vector<64xf32>
    %17 = vector.shape_cast %16 : vector<64xf32> to vector<1x64xf32>
    %cst_11 = arith.constant 1.280000e+02 : f32
    %18 = vector.broadcast %cst_11 : f32 to vector<1x64xf32>
    %19 = arith.divf %17, %18 : vector<1x64xf32>
    %20 = arith.mulf %14, %14 : vector<1x64xf32>
    %21 = arith.subf %19, %20 : vector<1x64xf32>
    %c0_12 = arith.constant 0 : index
    %c0_13 = arith.constant 0 : index
    %22 = vector.load %arg3[%c0_12, %c0_13] : memref<1x64xf32, #tpu.memory_space<vmem>>, vector<1x64xf32>
    %cst_14 = arith.constant 9.99999974E-6 : f32
    %23 = vector.broadcast %cst_14 : f32 to vector<1x64xf32>
    %24 = arith.addf %21, %23 : vector<1x64xf32>
    %25 = math.rsqrt %24 : vector<1x64xf32>
    %26 = arith.mulf %22, %25 : vector<1x64xf32>
    %c0_15 = arith.constant 0 : index
    %c0_16 = arith.constant 0 : index
    %27 = vector.load %arg4[%c0_15, %c0_16] : memref<1x64xf32, #tpu.memory_space<vmem>>, vector<1x64xf32>
    %28 = arith.mulf %14, %26 : vector<1x64xf32>
    %29 = arith.subf %27, %28 : vector<1x64xf32>
    %30 = vector.broadcast %26 : vector<1x64xf32> to vector<128x64xf32>
    %31 = arith.mulf %10, %30 : vector<128x64xf32>
    %32 = vector.broadcast %29 : vector<1x64xf32> to vector<128x64xf32>
    %33 = arith.addf %31, %32 : vector<128x64xf32>
    %cst_17 = arith.constant 0.000000e+00 : f32
    %34 = vector.broadcast %cst_17 : f32 to vector<128x64xf32>
    %35 = arith.cmpf ogt, %33, %34 : vector<128x64xf32>
    %cst_18 = arith.constant 1.000000e-01 : f32
    %36 = vector.broadcast %cst_18 : f32 to vector<128x64xf32>
    %37 = arith.mulf %36, %33 : vector<128x64xf32>
    %38 = arith.select %35, %33, %37 : vector<128x64xi1>, vector<128x64xf32>
    %39 = vector.shape_cast %38 : vector<128x64xf32> to vector<8x16x64xf32>
    %c0_19 = arith.constant 0 : index
    %c0_20 = arith.constant 0 : index
    %40 = vector.load %arg5[%c0_19, %c0_20] : memref<16x64xf32, #tpu.memory_space<vmem>>, vector<16x64xf32>
    %41 = vector.shape_cast %40 : vector<16x64xf32> to vector<1x16x64xf32>
    %42 = vector.broadcast %41 : vector<1x16x64xf32> to vector<8x16x64xf32>
    %43 = arith.mulf %39, %42 : vector<8x16x64xf32>
    %cst_21 = arith.constant dense<0.000000e+00> : vector<8x16xf32>
    %44 = vector.multi_reduction <add>, %43, %cst_21 [2] : vector<8x16x64xf32> to vector<8x16xf32>
    %cst_22 = arith.constant dense<0.000000e+00> : vector<8xf32>
    %45 = vector.multi_reduction <add>, %44, %cst_22 [1] : vector<8x16xf32> to vector<8xf32>
    %46 = vector.shape_cast %45 : vector<8xf32> to vector<8x1xf32>
    %47 = arith.negf %46 : vector<8x1xf32>
    %48 = math.exp %47 : vector<8x1xf32>
    %cst_23 = arith.constant 1.000000e+00 : f32
    %49 = vector.broadcast %cst_23 : f32 to vector<8x1xf32>
    %50 = arith.addf %49, %48 : vector<8x1xf32>
    %51 = arith.divf %49, %50 : vector<8x1xf32>
    %c0_24 = arith.constant 0 : index
    %c0_25 = arith.constant 0 : index
    %52 = vector.load %arg6[%c0_24, %c0_25] : memref<8x1xf32, #tpu.memory_space<vmem>>, vector<8x1xf32>
    tpu.vector_store %arg6[%c0_24, %c0_25], %51 {strides = array<i32>} : memref<8x1xf32, #tpu.memory_space<vmem>>, vector<8x1xf32>,
    return
  }
}

</mosaic_0001>

<llo_original>
// kernel: _dcgan_netD_forward_impl.1
$region0: #{_dcgan_netD_forward_impl.1}
  #allocation0 [shape = 'u32[]', space=smem, size = 0x4, offset = 0x4, fixed_abs, tag = 'smem constant byte address 0x4 - core index']
  #allocation1 [shape = 'u32[144,128]{1,0:T(1,128)}', space=vmem, size = 0x12000, scoped, tag = 'internal scratch']
  %s0 = inlined_call_operand.vmem [shape: bf16[128,256], index: 0, kind: input, shape index: {}]
  %s1 = inlined_call_operand.vmem [shape: bf16[256,512], index: 1, kind: input, shape index: {}]
  %s2 = inlined_call_operand.vmem [shape: bf16[512,64], index: 2, kind: input, shape index: {}]
  %s3 = inlined_call_operand.vmem [shape: f32[1,64], index: 3, kind: input, shape index: {}]
  %s4 = inlined_call_operand.vmem [shape: f32[1,64], index: 4, kind: input, shape index: {}]
  %s5 = inlined_call_operand.vmem [shape: f32[16,64], index: 5, kind: input, shape index: {}]
  %s6 = inlined_call_operand.vmem [shape: f32[8,1], index: 6, kind: output, shape index: {}]
  %s7 = sld [smem:[#allocation0]]
  $region34: #{_dcgan_netD_forward_impl.1} parent=0
    _
  %s9 = ssub.s32 1, %s7
  %s10 = scalar_select 0, %s9, %s7
  // Predicated region
  $region2: #{_dcgan_netD_forward_impl.1} parent=0 // pred_check
    _
  $region3: #{_dcgan_netD_forward_impl.1} parent=0 // pred_check_branch
    %12 = sbr.rel (0) target = $region5
  $region4: #{_dcgan_netD_forward_impl.1} parent=0 // pred_region
    _
  $region5: #{_dcgan_netD_forward_impl.1} parent=0 // pred_fallthru
    _
  // Predicated region
  $region6: #{_dcgan_netD_forward_impl.1} parent=0 // pred_check
    _
  $region7: #{_dcgan_netD_forward_impl.1} parent=0 // pred_check_branch
    %14 = sbr.rel (0) target = $region9
  $region8: #{_dcgan_netD_forward_impl.1} parent=0 // pred_region
    _
  $region9: #{_dcgan_netD_forward_impl.1} parent=0 // pred_fallthru
    _
  // Predicated region
  $region10: #{_dcgan_netD_forward_impl.1} parent=0 // pred_check
    _
  $region11: #{_dcgan_netD_forward_impl.1} parent=0 // pred_check_branch
    %16 = sbr.rel (0) target = $region13
  $region12: #{_dcgan_netD_forward_impl.1} parent=0 // pred_region
    _
  $region13: #{_dcgan_netD_forward_impl.1} parent=0 // pred_fallthru
    _
  // Predicated region
  $region14: #{_dcgan_netD_forward_impl.1} parent=0 // pred_check
    _
  $region15: #{_dcgan_netD_forward_impl.1} parent=0 // pred_check_branch
    %18 = sbr.rel (0) target = $region17
  $region16: #{_dcgan_netD_forward_impl.1} parent=0 // pred_region
    _
  $region17: #{_dcgan_netD_forward_impl.1} parent=0 // pred_fallthru
    _
  // Predicated region
  $region18: #{_dcgan_netD_forward_impl.1} parent=0 // pred_check
    _
  $region19: #{_dcgan_netD_forward_impl.1} parent=0 // pred_check_branch
    %20 = sbr.rel (0) target = $region21
  $region20: #{_dcgan_netD_forward_impl.1} parent=0 // pred_region
    _
  $region21: #{_dcgan_netD_forward_impl.1} parent=0 // pred_fallthru
    _
  // Predicated region
  $region22: #{_dcgan_netD_forward_impl.1} parent=0 // pred_check
    _
  $region23: #{_dcgan_netD_forward_impl.1} parent=0 // pred_check_branch
    %22 = sbr.rel (0) target = $region25
  $region24: #{_dcgan_netD_forward_impl.1} parent=0 // pred_region
    _
  $region25: #{_dcgan_netD_forward_impl.1} parent=0 // pred_fallthru
    _
  %v24 = vld [vmem:[%s0] sm:$0xff]
  %v25 = vld [vmem:[%s0 + $0x8] sm:$0xff]
  %v26 = vld [vmem:[%s0 + $0x10] sm:$0xff]
  %v27 = vld [vmem:[%s0 + $0x18] sm:$0xff]
  %v28 = vld [vmem:[%s0 + $0x20] sm:$0xff]
  %v29 = vld [vmem:[%s0 + $0x28] sm:$0xff]
  %v30 = vld [vmem:[%s0 + $0x30] sm:$0xff]
  %v31 = vld [vmem:[%s0 + $0x38] sm:$0xff]
  %v32 = vld [vmem:[%s0 + $0x40] sm:$0xff]
  %v33 = vld [vmem:[%s0 + $0x48] sm:$0xff]
  %v34 = vld [vmem:[%s0 + $0x50] sm:$0xff]
  %v35 = vld [vmem:[%s0 + $0x58] sm:$0xff]
  %v36 = vld [vmem:[%s0 + $0x60] sm:$0xff]
  %v37 = vld [vmem:[%s0 + $0x68] sm:$0xff]
  %v38 = vld [vmem:[%s0 + $0x70] sm:$0xff]
  %v39 = vld [vmem:[%s0 + $0x78] sm:$0xff]
  %v40 = vld [vmem:[%s1] sm:$0xff]
  %v41 = vld [vmem:[%s1 + $0x8] sm:$0xff]
  %v42 = vld [vmem:[%s1 + $0x10] sm:$0xff]
  %v43 = vld [vmem:[%s1 + $0x18] sm:$0xff]
  %v44 = vld [vmem:[%s1 + $0x20] sm:$0xff]
  %v45 = vld [vmem:[%s1 + $0x28] sm:$0xff]
  %v46 = vld [vmem:[%s1 + $0x30] sm:$0xff]
  %v47 = vld [vmem:[%s1 + $0x38] sm:$0xff]
  %v48 = vld [vmem:[%s1 + $0x40] sm:$0xff]
  %v49 = vld [vmem:[%s1 + $0x48] sm:$0xff]
  %v50 = vld [vmem:[%s1 + $0x50] sm:$0xff]
  %v51 = vld [vmem:[%s1 + $0x58] sm:$0xff]
  %v52 = vld [vmem:[%s1 + $0x60] sm:$0xff]
  %v53 = vld [vmem:[%s1 + $0x68] sm:$0xff]
  %v54 = vld [vmem:[%s1 + $0x70] sm:$0xff]
  %v55 = vld [vmem:[%s1 + $0x78] sm:$0xff]
  %v56 = vld [vmem:[%s1 + $0x80] sm:$0xff]
  %v57 = vld [vmem:[%s1 + $0x88] sm:$0xff]
  %v58 = vld [vmem:[%s1 + $0x90] sm:$0xff]
  %v59 = vld [vmem:[%s1 + $0x98] sm:$0xff]
  %v60 = vld [vmem:[%s1 + $0xa0] sm:$0xff]
  %v61 = vld [vmem:[%s1 + $0xa8] sm:$0xff]
  %v62 = vld [vmem:[%s1 + $0xb0] sm:$0xff]
  %v63 = vld [vmem:[%s1 + $0xb8] sm:$0xff]
  %v64 = vld [vmem:[%s1 + $0xc0] sm:$0xff]
  %v65 = vld [vmem:[%s1 + $0xc8] sm:$0xff]
  %v66 = vld [vmem:[%s1 + $0xd0] sm:$0xff]
  %v67 = vld [vmem:[%s1 + $0xd8] sm:$0xff]
  %v68 = vld [vmem:[%s1 + $0xe0] sm:$0xff]
  %v69 = vld [vmem:[%s1 + $0xe8] sm:$0xff]
  %v70 = vld [vmem:[%s1 + $0xf0] sm:$0xff]
  %v71 = vld [vmem:[%s1 + $0xf8] sm:$0xff]
  %v72 = vld [vmem:[%s1 + $0x100] sm:$0xff]
  %v73 = vld [vmem:[%s1 + $0x108] sm:$0xff]
  %v74 = vld [vmem:[%s1 + $0x110] sm:$0xff]
  %v75 = vld [vmem:[%s1 + $0x118] sm:$0xff]
  %v76 = vld [vmem:[%s1 + $0x120] sm:$0xff]
  %v77 = vld [vmem:[%s1 + $0x128] sm:$0xff]
  %v78 = vld [vmem:[%s1 + $0x130] sm:$0xff]
  %v79 = vld [vmem:[%s1 + $0x138] sm:$0xff]
  %v80 = vld [vmem:[%s1 + $0x140] sm:$0xff]
  %v81 = vld [vmem:[%s1 + $0x148] sm:$0xff]
  %v82 = vld [vmem:[%s1 + $0x150] sm:$0xff]
  %v83 = vld [vmem:[%s1 + $0x158] sm:$0xff]
  %v84 = vld [vmem:[%s1 + $0x160] sm:$0xff]
  %v85 = vld [vmem:[%s1 + $0x168] sm:$0xff]
  %v86 = vld [vmem:[%s1 + $0x170] sm:$0xff]
  %v87 = vld [vmem:[%s1 + $0x178] sm:$0xff]
  %v88 = vld [vmem:[%s1 + $0x180] sm:$0xff]
  %v89 = vld [vmem:[%s1 + $0x188] sm:$0xff]
  %v90 = vld [vmem:[%s1 + $0x190] sm:$0xff]
  %v91 = vld [vmem:[%s1 + $0x198] sm:$0xff]
  %v92 = vld [vmem:[%s1 + $0x1a0] sm:$0xff]
  %v93 = vld [vmem:[%s1 + $0x1a8] sm:$0xff]
  %v94 = vld [vmem:[%s1 + $0x1b0] sm:$0xff]
  %v95 = vld [vmem:[%s1 + $0x1b8] sm:$0xff]
  %v96 = vld [vmem:[%s1 + $0x1c0] sm:$0xff]
  %v97 = vld [vmem:[%s1 + $0x1c8] sm:$0xff]
  %v98 = vld [vmem:[%s1 + $0x1d0] sm:$0xff]
  %v99 = vld [vmem:[%s1 + $0x1d8] sm:$0xff]
  %v100 = vld [vmem:[%s1 + $0x1e0] sm:$0xff]
  %v101 = vld [vmem:[%s1 + $0x1e8] sm:$0xff]
  %v102 = vld [vmem:[%s1 + $0x1f0] sm:$0xff]
  %v103 = vld [vmem:[%s1 + $0x1f8] sm:$0xff]
  %v120 = vunpack.c.l.b16 %v24
  %v121 = vunpack.c.h.b16 %v24
  %v122 = vunpack.c.l.b16 %v25
  %v123 = vunpack.c.h.b16 %v25
  %v124 = vunpack.c.l.b16 %v26
  %v125 = vunpack.c.h.b16 %v26
  %v126 = vunpack.c.l.b16 %v27
  %v127 = vunpack.c.h.b16 %v27
  %v128 = vunpack.c.l.b16 %v28
  %v129 = vunpack.c.h.b16 %v28
  %v130 = vunpack.c.l.b16 %v29
  %v131 = vunpack.c.h.b16 %v29
  %v132 = vunpack.c.l.b16 %v30
  %v133 = vunpack.c.h.b16 %v30
  %v134 = vunpack.c.l.b16 %v31
  %v135 = vunpack.c.h.b16 %v31
  %v136 = vunpack.c.l.b16 %v32
  %v137 = vunpack.c.h.b16 %v32
  %v138 = vunpack.c.l.b16 %v33
  %v139 = vunpack.c.h.b16 %v33
  %v140 = vunpack.c.l.b16 %v34
  %v141 = vunpack.c.h.b16 %v34
  %v142 = vunpack.c.l.b16 %v35
  %v143 = vunpack.c.h.b16 %v35
  %v144 = vunpack.c.l.b16 %v36
  %v145 = vunpack.c.h.b16 %v36
  %v146 = vunpack.c.l.b16 %v37
  %v147 = vunpack.c.h.b16 %v37
  %v148 = vunpack.c.l.b16 %v38
  %v149 = vunpack.c.h.b16 %v38
  %v150 = vunpack.c.l.b16 %v39
  %v151 = vunpack.c.h.b16 %v39
  %v152 = vpack.c.b16 %v122, %v120
  %v153 = vpack.c.b16 %v123, %v121
  %v154 = vpack.c.b16 %v126, %v124
  %v155 = vpack.c.b16 %v127, %v125
  %v156 = vpack.c.b16 %v130, %v128
  %v157 = vpack.c.b16 %v131, %v129
  %v158 = vpack.c.b16 %v134, %v132
  %v159 = vpack.c.b16 %v135, %v133
  %v160 = vpack.c.b16 %v138, %v136
  %v161 = vpack.c.b16 %v139, %v137
  %v162 = vpack.c.b16 %v142, %v140
  %v163 = vpack.c.b16 %v143, %v141
  %v164 = vpack.c.b16 %v146, %v144
  %v165 = vpack.c.b16 %v147, %v145
  %v166 = vpack.c.b16 %v150, %v148
  %v167 = vpack.c.b16 %v151, %v149
  %v248 = vunpack.c.l.b16 %v40
  %v249 = vunpack.c.h.b16 %v40
  %v250 = vunpack.c.l.b16 %v41
  %v251 = vunpack.c.h.b16 %v41
  %v252 = vunpack.c.l.b16 %v42
  %v253 = vunpack.c.h.b16 %v42
  %v254 = vunpack.c.l.b16 %v43
  %v255 = vunpack.c.h.b16 %v43
  %v256 = vunpack.c.l.b16 %v44
  %v257 = vunpack.c.h.b16 %v44
  %v258 = vunpack.c.l.b16 %v45
  %v259 = vunpack.c.h.b16 %v45
  %v260 = vunpack.c.l.b16 %v46
  %v261 = vunpack.c.h.b16 %v46
  %v262 = vunpack.c.l.b16 %v47
  %v263 = vunpack.c.h.b16 %v47
  %v264 = vunpack.c.l.b16 %v48
  %v265 = vunpack.c.h.b16 %v48
  %v266 = vunpack.c.l.b16 %v49
  %v267 = vunpack.c.h.b16 %v49
  %v268 = vunpack.c.l.b16 %v50
  %v269 = vunpack.c.h.b16 %v50
  %v270 = vunpack.c.l.b16 %v51
  %v271 = vunpack.c.h.b16 %v51
  %v272 = vunpack.c.l.b16 %v52
  %v273 = vunpack.c.h.b16 %v52
  %v274 = vunpack.c.l.b16 %v53
  %v275 = vunpack.c.h.b16 %v53
  %v276 = vunpack.c.l.b16 %v54
  %v277 = vunpack.c.h.b16 %v54
  %v278 = vunpack.c.l.b16 %v55
  %v279 = vunpack.c.h.b16 %v55
  %v280 = vunpack.c.l.b16 %v56
  %v281 = vunpack.c.h.b16 %v56
  %v282 = vunpack.c.l.b16 %v57
  %v283 = vunpack.c.h.b16 %v57
  %v284 = vunpack.c.l.b16 %v58
  %v285 = vunpack.c.h.b16 %v58
  %v286 = vunpack.c.l.b16 %v59
  %v287 = vunpack.c.h.b16 %v59
  %v288 = vunpack.c.l.b16 %v60
  %v289 = vunpack.c.h.b16 %v60
  %v290 = vunpack.c.l.b16 %v61
  %v291 = vunpack.c.h.b16 %v61
  %v292 = vunpack.c.l.b16 %v62
  %v293 = vunpack.c.h.b16 %v62
  %v294 = vunpack.c.l.b16 %v63
  %v295 = vunpack.c.h.b16 %v63
  %v296 = vunpack.c.l.b16 %v64
  %v297 = vunpack.c.h.b16 %v64
  %v298 = vunpack.c.l.b16 %v65
  %v299 = vunpack.c.h.b16 %v65
  %v300 = vunpack.c.l.b16 %v66
  %v301 = vunpack.c.h.b16 %v66
  %v302 = vunpack.c.l.b16 %v67
  %v303 = vunpack.c.h.b16 %v67
  %v304 = vunpack.c.l.b16 %v68
  %v305 = vunpack.c.h.b16 %v68
  %v306 = vunpack.c.l.b16 %v69
  %v307 = vunpack.c.h.b16 %v69
  %v308 = vunpack.c.l.b16 %v70
  %v309 = vunpack.c.h.b16 %v70
  %v310 = vunpack.c.l.b16 %v71
  %v311 = vunpack.c.h.b16 %v71
  %v312 = vunpack.c.l.b16 %v72
  %v313 = vunpack.c.h.b16 %v72
  %v314 = vunpack.c.l.b16 %v73
  %v315 = vunpack.c.h.b16 %v73
  %v316 = vunpack.c.l.b16 %v74
  %v317 = vunpack.c.h.b16 %v74
  %v318 = vunpack.c.l.b16 %v75
  %v319 = vunpack.c.h.b16 %v75
  %v320 = vunpack.c.l.b16 %v76
  %v321 = vunpack.c.h.b16 %v76
  %v322 = vunpack.c.l.b16 %v77
  %v323 = vunpack.c.h.b16 %v77
  %v324 = vunpack.c.l.b16 %v78
  %v325 = vunpack.c.h.b16 %v78
  %v326 = vunpack.c.l.b16 %v79
  %v327 = vunpack.c.h.b16 %v79
  %v328 = vunpack.c.l.b16 %v80
  %v329 = vunpack.c.h.b16 %v80
  %v330 = vunpack.c.l.b16 %v81
  %v331 = vunpack.c.h.b16 %v81
  %v332 = vunpack.c.l.b16 %v82
  %v333 = vunpack.c.h.b16 %v82
  %v334 = vunpack.c.l.b16 %v83
  %v335 = vunpack.c.h.b16 %v83
  %v336 = vunpack.c.l.b16 %v84
  %v337 = vunpack.c.h.b16 %v84
  %v338 = vunpack.c.l.b16 %v85
  %v339 = vunpack.c.h.b16 %v85
  %v340 = vunpack.c.l.b16 %v86
  %v341 = vunpack.c.h.b16 %v86
  %v342 = vunpack.c.l.b16 %v87
  %v343 = vunpack.c.h.b16 %v87
  %v344 = vunpack.c.l.b16 %v88
  %v345 = vunpack.c.h.b16 %v88
  %v346 = vunpack.c.l.b16 %v89
  %v347 = vunpack.c.h.b16 %v89
  %v348 = vunpack.c.l.b16 %v90
  %v349 = vunpack.c.h.b16 %v90
  %v350 = vunpack.c.l.b16 %v91
  %v351 = vunpack.c.h.b16 %v91
  %v352 = vunpack.c.l.b16 %v92
  %v353 = vunpack.c.h.b16 %v92
  %v354 = vunpack.c.l.b16 %v93
  %v355 = vunpack.c.h.b16 %v93
  %v356 = vunpack.c.l.b16 %v94
  %v357 = vunpack.c.h.b16 %v94
  %v358 = vunpack.c.l.b16 %v95
  %v359 = vunpack.c.h.b16 %v95
  %v360 = vunpack.c.l.b16 %v96
  %v361 = vunpack.c.h.b16 %v96
  %v362 = vunpack.c.l.b16 %v97
  %v363 = vunpack.c.h.b16 %v97
  %v364 = vunpack.c.l.b16 %v98
  %v365 = vunpack.c.h.b16 %v98
  %v366 = vunpack.c.l.b16 %v99
  %v367 = vunpack.c.h.b16 %v99
  %v368 = vunpack.c.l.b16 %v100
  %v369 = vunpack.c.h.b16 %v100
  %v370 = vunpack.c.l.b16 %v101
  %v371 = vunpack.c.h.b16 %v101
  %v372 = vunpack.c.l.b16 %v102
  %v373 = vunpack.c.h.b16 %v102
  %v374 = vunpack.c.l.b16 %v103
  %v375 = vunpack.c.h.b16 %v103
  %v376 = vpack.c.b16 %v252, %v248
  %v377 = vpack.c.b16 %v253, %v249
  %v378 = vpack.c.b16 %v254, %v250
  %v379 = vpack.c.b16 %v255, %v251
  %v380 = vpack.c.b16 %v260, %v256
  %v381 = vpack.c.b16 %v261, %v257
  %v382 = vpack.c.b16 %v262, %v258
  %v383 = vpack.c.b16 %v263, %v259
  %v384 = vpack.c.b16 %v268, %v264
  %v385 = vpack.c.b16 %v269, %v265
  %v386 = vpack.c.b16 %v270, %v266
  %v387 = vpack.c.b16 %v271, %v267
  %v388 = vpack.c.b16 %v276, %v272
  %v389 = vpack.c.b16 %v277, %v273
  %v390 = vpack.c.b16 %v278, %v274
  %v391 = vpack.c.b16 %v279, %v275
  %v392 = vpack.c.b16 %v284, %v280
  %v393 = vpack.c.b16 %v285, %v281
  %v394 = vpack.c.b16 %v286, %v282
  %v395 = vpack.c.b16 %v287, %v283
  %v396 = vpack.c.b16 %v292, %v288
  %v397 = vpack.c.b16 %v293, %v289
  %v398 = vpack.c.b16 %v294, %v290
  %v399 = vpack.c.b16 %v295, %v291
  %v400 = vpack.c.b16 %v300, %v296
  %v401 = vpack.c.b16 %v301, %v297
  %v402 = vpack.c.b16 %v302, %v298
  %v403 = vpack.c.b16 %v303, %v299
  %v404 = vpack.c.b16 %v308, %v304
  %v405 = vpack.c.b16 %v309, %v305
  %v406 = vpack.c.b16 %v310, %v306
  %v407 = vpack.c.b16 %v311, %v307
  %v408 = vpack.c.b16 %v316, %v312
  %v409 = vpack.c.b16 %v317, %v313
  %v410 = vpack.c.b16 %v318, %v314
  %v411 = vpack.c.b16 %v319, %v315
  %v412 = vpack.c.b16 %v324, %v320
  %v413 = vpack.c.b16 %v325, %v321
  %v414 = vpack.c.b16 %v326, %v322
  %v415 = vpack.c.b16 %v327, %v323
  %v416 = vpack.c.b16 %v332, %v328
  %v417 = vpack.c.b16 %v333, %v329
  %v418 = vpack.c.b16 %v334, %v330
  %v419 = vpack.c.b16 %v335, %v331
  %v420 = vpack.c.b16 %v340, %v336
  %v421 = vpack.c.b16 %v341, %v337
  %v422 = vpack.c.b16 %v342, %v338
  %v423 = vpack.c.b16 %v343, %v339
  %v424 = vpack.c.b16 %v348, %v344
  %v425 = vpack.c.b16 %v349, %v345
  %v426 = vpack.c.b16 %v350, %v346
  %v427 = vpack.c.b16 %v351, %v347
  %v428 = vpack.c.b16 %v356, %v352
  %v429 = vpack.c.b16 %v357, %v353
  %v430 = vpack.c.b16 %v358, %v354
  %v431 = vpack.c.b16 %v359, %v355
  %v432 = vpack.c.b16 %v364, %v360
  %v433 = vpack.c.b16 %v365, %v361
  %v434 = vpack.c.b16 %v366, %v362
  %v435 = vpack.c.b16 %v367, %v363
  %v436 = vpack.c.b16 %v372, %v368
  %v437 = vpack.c.b16 %v373, %v369
  %v438 = vpack.c.b16 %v374, %v370
  %v439 = vpack.c.b16 %v375, %v371
  %504 = vmatprep.subr.bf16.mxu0 %v377
  %505 = vmatpush1.bf16.msra.mxu0 %v376
  %506 = vmatprep.subr.bf16.mxu0 %v381
  %507 = vmatpush1.bf16.msra.mxu0 %v380
  %508 = vmatprep.subr.bf16.mxu0 %v385
  %509 = vmatpush1.bf16.msra.mxu0 %v384
  %510 = vmatprep.subr.bf16.mxu0 %v389
  %511 = vmatpush1.bf16.msra.mxu0 %v388
  %512 = vmatprep.subr.bf16.mxu0 %v393
  %513 = vmatpush1.bf16.msra.mxu0 %v392
  %514 = vmatprep.subr.bf16.mxu0 %v397
  %515 = vmatpush1.bf16.msra.mxu0 %v396
  %516 = vmatprep.subr.bf16.mxu0 %v401
  %517 = vmatpush1.bf16.msra.mxu0 %v400
  %518 = vmatprep.subr.bf16.mxu0 %v405
  %519 = vmatpush1.bf16.msra.mxu0 %v404
  %520 = vmatprep.subr.bf16.mxu0 %v409
  %521 = vmatpush1.bf16.msra.mxu0 %v408
  %522 = vmatprep.subr.bf16.mxu0 %v413
  %523 = vmatpush1.bf16.msra.mxu0 %v412
  %524 = vmatprep.subr.bf16.mxu0 %v417
  %525 = vmatpush1.bf16.msra.mxu0 %v416
  %526 = vmatprep.subr.bf16.mxu0 %v421
  %527 = vmatpush1.bf16.msra.mxu0 %v420
  %528 = vmatprep.subr.bf16.mxu0 %v425
  %529 = vmatpush1.bf16.msra.mxu0 %v424
  %530 = vmatprep.subr.bf16.mxu0 %v429
  %531 = vmatpush1.bf16.msra.mxu0 %v428
  %532 = vmatprep.subr.bf16.mxu0 %v433
  %533 = vmatpush1.bf16.msra.mxu0 %v432
  %534 = vmatprep.subr.bf16.mxu0 %v437
  %535 = vmatpush1.bf16.msra.mxu0 %v436
  %536 = vmatprep.mubr.bf16.mxu0 %v153
  %537 = vmatmul.mubr.bf16.gmra.mrb[0].mxu0 %v152
  %v538 = vpop.f32.mrb[0].mxu0
  %v539 = vadd.f32 0.0, %v538
  %v540 = vpop.f32.mrb[0].mxu0
  %v541 = vadd.f32 0.0, %v540
  %v542 = vpop.f32.mrb[0].mxu0
  %v543 = vadd.f32 0.0, %v542
  %v544 = vpop.f32.mrb[0].mxu0
  %v545 = vadd.f32 0.0, %v544
  %546 = vmatprep.mubr.bf16.mxu0 %v155
  %547 = vmatmul.mubr.bf16.gmra.mrb[0].mxu0 %v154
  %v548 = vpop.f32.mrb[0].mxu0
  %v549 = vadd.f32 0.0, %v548
  %v550 = vpop.f32.mrb[0].mxu0
  %v551 = vadd.f32 0.0, %v550
  %v552 = vpop.f32.mrb[0].mxu0
  %v553 = vadd.f32 0.0, %v552
  %v554 = vpop.f32.mrb[0].mxu0
  %v555 = vadd.f32 0.0, %v554
  %556 = vmatprep.mubr.bf16.mxu0 %v157
  %557 = vmatmul.mubr.bf16.gmra.mrb[0].mxu0 %v156
  %v558 = vpop.f32.mrb[0].mxu0
  %v559 = vadd.f32 0.0, %v558
  %v560 = vpop.f32.mrb[0].mxu0
  %v561 = vadd.f32 0.0, %v560
  %v562 = vpop.f32.mrb[0].mxu0
  %v563 = vadd.f32 0.0, %v562
  %v564 = vpop.f32.mrb[0].mxu0
  %v565 = vadd.f32 0.0, %v564
  %566 = vmatprep.mubr.bf16.mxu0 %v159
  %567 = vmatmul.mubr.bf16.gmra.mrb[0].mxu0 %v158
  %v568 = vpop.f32.mrb[0].mxu0
  %v569 = vadd.f32 0.0, %v568
  %v570 = vpop.f32.mrb[0].mxu0
  %v571 = vadd.f32 0.0, %v570
  %v572 = vpop.f32.mrb[0].mxu0
  %v573 = vadd.f32 0.0, %v572
  %v574 = vpop.f32.mrb[0].mxu0
  %v575 = vadd.f32 0.0, %v574
  %576 = vmatprep.mubr.bf16.mxu0 %v161
  %577 = vmatmul.mubr.bf16.gmra.mrb[0].mxu0 %v160
  %v578 = vpop.f32.mrb[0].mxu0
  %v579 = vadd.f32 0.0, %v578
  %v580 = vpop.f32.mrb[0].mxu0
  %v581 = vadd.f32 0.0, %v580
  %v582 = vpop.f32.mrb[0].mxu0
  %v583 = vadd.f32 0.0, %v582
  %v584 = vpop.f32.mrb[0].mxu0
  %v585 = vadd.f32 0.0, %v584
  %586 = vmatprep.mubr.bf16.mxu0 %v163
  %587 = vmatmul.mubr.bf16.gmra.mrb[0].mxu0 %v162
  %v588 = vpop.f32.mrb[0].mxu0
  %v589 = vadd.f32 0.0, %v588
  %v590 = vpop.f32.mrb[0].mxu0
  %v591 = vadd.f32 0.0, %v590
  %v592 = vpop.f32.mrb[0].mxu0
  %v593 = vadd.f32 0.0, %v592
  %v594 = vpop.f32.mrb[0].mxu0
  %v595 = vadd.f32 0.0, %v594
  %596 = vmatprep.mubr.bf16.mxu0 %v165
  %597 = vmatmul.mubr.bf16.gmra.mrb[0].mxu0 %v164
  %v598 = vpop.f32.mrb[0].mxu0
  %v599 = vadd.f32 0.0, %v598
  %v600 = vpop.f32.mrb[0].mxu0
  %v601 = vadd.f32 0.0, %v600
  %v602 = vpop.f32.mrb[0].mxu0
  %v603 = vadd.f32 0.0, %v602
  %v604 = vpop.f32.mrb[0].mxu0
  %v605 = vadd.f32 0.0, %v604
  %606 = vmatprep.mubr.bf16.mxu0 %v167
  %607 = vmatmul.mubr.bf16.gmra.mrb[0].mxu0 %v166
  %v608 = vpop.f32.mrb[0].mxu0
  %v609 = vadd.f32 0.0, %v608
  %v610 = vpop.f32.mrb[0].mxu0
  %v611 = vadd.f32 0.0, %v610
  %v612 = vpop.f32.mrb[0].mxu0
  %v613 = vadd.f32 0.0, %v612
  %v614 = vpop.f32.mrb[0].mxu0
  %v615 = vadd.f32 0.0, %v614
  %616 = vdwg.mxu0
  %617 = vmatprep.subr.bf16.mxu0 %v379
  %618 = vmatpush1.bf16.msra.mxu0 %v378
  %619 = vmatprep.subr.bf16.mxu0 %v383
  %620 = vmatpush1.bf16.msra.mxu0 %v382
  %621 = vmatprep.subr.bf16.mxu0 %v387
  %622 = vmatpush1.bf16.msra.mxu0 %v386
  %623 = vmatprep.subr.bf16.mxu0 %v391
  %624 = vmatpush1.bf16.msra.mxu0 %v390
  %625 = vmatprep.subr.bf16.mxu0 %v395
  %626 = vmatpush1.bf16.msra.mxu0 %v394
  %627 = vmatprep.subr.bf16.mxu0 %v399
  %628 = vmatpush1.bf16.msra.mxu0 %v398
  %629 = vmatprep.subr.bf16.mxu0 %v403
  %630 = vmatpush1.bf16.msra.mxu0 %v402
  %631 = vmatprep.subr.bf16.mxu0 %v407
  %632 = vmatpush1.bf16.msra.mxu0 %v406
  %633 = vmatprep.subr.bf16.mxu0 %v411
  %634 = vmatpush1.bf16.msra.mxu0 %v410
  %635 = vmatprep.subr.bf16.mxu0 %v415
  %636 = vmatpush1.bf16.msra.mxu0 %v414
  %637 = vmatprep.subr.bf16.mxu0 %v419
  %638 = vmatpush1.bf16.msra.mxu0 %v418
  %639 = vmatprep.subr.bf16.mxu0 %v423
  %640 = vmatpush1.bf16.msra.mxu0 %v422
  %641 = vmatprep.subr.bf16.mxu0 %v427
  %642 = vmatpush1.bf16.msra.mxu0 %v426
  %643 = vmatprep.subr.bf16.mxu0 %v431
  %644 = vmatpush1.bf16.msra.mxu0 %v430
  %645 = vmatprep.subr.bf16.mxu0 %v435
  %646 = vmatpush1.bf16.msra.mxu0 %v434
  %647 = vmatprep.subr.bf16.mxu0 %v439
  %648 = vmatpush1.bf16.msra.mxu0 %v438
  %649 = vmatprep.mubr.bf16.mxu0 %v153
  %650 = vmatmul.mubr.bf16.gmra.mrb[0].mxu0 %v152
  %v651 = vpop.f32.mrb[0].mxu0
  %v652 = vadd.f32 0.0, %v651
  %v653 = vpop.f32.mrb[0].mxu0
  %v654 = vadd.f32 0.0, %v653
  %v655 = vpop.f32.mrb[0].mxu0
  %v656 = vadd.f32 0.0, %v655
  %v657 = vpop.f32.mrb[0].mxu0
  %v658 = vadd.f32 0.0, %v657
  %659 = vmatprep.mubr.bf16.mxu0 %v155
  %660 = vmatmul.mubr.bf16.gmra.mrb[0].mxu0 %v154
  %v661 = vpop.f32.mrb[0].mxu0
  %v662 = vadd.f32 0.0, %v661
  %v663 = vpop.f32.mrb[0].mxu0
  %v664 = vadd.f32 0.0, %v663
  %v665 = vpop.f32.mrb[0].mxu0
  %v666 = vadd.f32 0.0, %v665
  %v667 = vpop.f32.mrb[0].mxu0
  %v668 = vadd.f32 0.0, %v667
  %669 = vmatprep.mubr.bf16.mxu0 %v157
  %670 = vmatmul.mubr.bf16.gmra.mrb[0].mxu0 %v156
  %v671 = vpop.f32.mrb[0].mxu0
  %v672 = vadd.f32 0.0, %v671
  %v673 = vpop.f32.mrb[0].mxu0
  %v674 = vadd.f32 0.0, %v673
  %v675 = vpop.f32.mrb[0].mxu0
  %v676 = vadd.f32 0.0, %v675
  %v677 = vpop.f32.mrb[0].mxu0
  %v678 = vadd.f32 0.0, %v677
  %679 = vmatprep.mubr.bf16.mxu0 %v159
  %680 = vmatmul.mubr.bf16.gmra.mrb[0].mxu0 %v158
  %v681 = vpop.f32.mrb[0].mxu0
  %v682 = vadd.f32 0.0, %v681
  %v683 = vpop.f32.mrb[0].mxu0
  %v684 = vadd.f32 0.0, %v683
  %v685 = vpop.f32.mrb[0].mxu0
  %v686 = vadd.f32 0.0, %v685
  %v687 = vpop.f32.mrb[0].mxu0
  %v688 = vadd.f32 0.0, %v687
  %689 = vmatprep.mubr.bf16.mxu0 %v161
  %690 = vmatmul.mubr.bf16.gmra.mrb[0].mxu0 %v160
  %v691 = vpop.f32.mrb[0].mxu0
  %v692 = vadd.f32 0.0, %v691
  %v693 = vpop.f32.mrb[0].mxu0
  %v694 = vadd.f32 0.0, %v693
  %v695 = vpop.f32.mrb[0].mxu0
  %v696 = vadd.f32 0.0, %v695
  %v697 = vpop.f32.mrb[0].mxu0
  %v698 = vadd.f32 0.0, %v697
  %699 = vmatprep.mubr.bf16.mxu0 %v163
  %700 = vmatmul.mubr.bf16.gmra.mrb[0].mxu0 %v162
  %v701 = vpop.f32.mrb[0].mxu0
  %v702 = vadd.f32 0.0, %v701
  %v703 = vpop.f32.mrb[0].mxu0
  %v704 = vadd.f32 0.0, %v703
  %v705 = vpop.f32.mrb[0].mxu0
  %v706 = vadd.f32 0.0, %v705
  %v707 = vpop.f32.mrb[0].mxu0
  %v708 = vadd.f32 0.0, %v707
  %709 = vmatprep.mubr.bf16.mxu0 %v165
  %710 = vmatmul.mubr.bf16.gmra.mrb[0].mxu0 %v164
  %v711 = vpop.f32.mrb[0].mxu0
  %v712 = vadd.f32 0.0, %v711
  %v713 = vpop.f32.mrb[0].mxu0
  %v714 = vadd.f32 0.0, %v713
  %v715 = vpop.f32.mrb[0].mxu0
  %v716 = vadd.f32 0.0, %v715
  %v717 = vpop.f32.mrb[0].mxu0
  %v718 = vadd.f32 0.0, %v717
  %719 = vmatprep.mubr.bf16.mxu0 %v167
  %720 = vmatmul.mubr.bf16.gmra.mrb[0].mxu0 %v166
  %v721 = vpop.f32.mrb[0].mxu0
  %v722 = vadd.f32 0.0, %v721
  %v723 = vpop.f32.mrb[0].mxu0
  %v724 = vadd.f32 0.0, %v723
  %v725 = vpop.f32.mrb[0].mxu0
  %v726 = vadd.f32 0.0, %v725
  %v727 = vpop.f32.mrb[0].mxu0
  %v728 = vadd.f32 0.0, %v727
  %729 = vdwg.mxu0
  %vm730 = vcmp.gt.f32.partialorder %v539, 0.0
  %vm731 = vcmp.gt.f32.partialorder %v541, 0.0
  %vm732 = vcmp.gt.f32.partialorder %v652, 0.0
  %vm733 = vcmp.gt.f32.partialorder %v654, 0.0
  %vm734 = vcmp.gt.f32.partialorder %v543, 0.0
  %vm735 = vcmp.gt.f32.partialorder %v545, 0.0
  %vm736 = vcmp.gt.f32.partialorder %v656, 0.0
  %vm737 = vcmp.gt.f32.partialorder %v658, 0.0
  %vm738 = vcmp.gt.f32.partialorder %v549, 0.0
  %vm739 = vcmp.gt.f32.partialorder %v551, 0.0
  %vm740 = vcmp.gt.f32.partialorder %v662, 0.0
  %vm741 = vcmp.gt.f32.partialorder %v664, 0.0
  %vm742 = vcmp.gt.f32.partialorder %v553, 0.0
  %vm743 = vcmp.gt.f32.partialorder %v555, 0.0
  %vm744 = vcmp.gt.f32.partialorder %v666, 0.0
  %vm745 = vcmp.gt.f32.partialorder %v668, 0.0
  %vm746 = vcmp.gt.f32.partialorder %v559, 0.0
  %vm747 = vcmp.gt.f32.partialorder %v561, 0.0
  %vm748 = vcmp.gt.f32.partialorder %v672, 0.0
  %vm749 = vcmp.gt.f32.partialorder %v674, 0.0
  %vm750 = vcmp.gt.f32.partialorder %v563, 0.0
  %vm751 = vcmp.gt.f32.partialorder %v565, 0.0
  %vm752 = vcmp.gt.f32.partialorder %v676, 0.0
  %vm753 = vcmp.gt.f32.partialorder %v678, 0.0
  %vm754 = vcmp.gt.f32.partialorder %v569, 0.0
  %vm755 = vcmp.gt.f32.partialorder %v571, 0.0
  %vm756 = vcmp.gt.f32.partialorder %v682, 0.0
  %vm757 = vcmp.gt.f32.partialorder %v684, 0.0
  %vm758 = vcmp.gt.f32.partialorder %v573, 0.0
  %vm759 = vcmp.gt.f32.partialorder %v575, 0.0
  %vm760 = vcmp.gt.f32.partialorder %v686, 0.0
  %vm761 = vcmp.gt.f32.partialorder %v688, 0.0
  %vm762 = vcmp.gt.f32.partialorder %v579, 0.0
  %vm763 = vcmp.gt.f32.partialorder %v581, 0.0
  %vm764 = vcmp.gt.f32.partialorder %v692, 0.0
  %vm765 = vcmp.gt.f32.partialorder %v694, 0.0
  %vm766 = vcmp.gt.f32.partialorder %v583, 0.0
  %vm767 = vcmp.gt.f32.partialorder %v585, 0.0
  %vm768 = vcmp.gt.f32.partialorder %v696, 0.0
  %vm769 = vcmp.gt.f32.partialorder %v698, 0.0
  %vm770 = vcmp.gt.f32.partialorder %v589, 0.0
  %vm771 = vcmp.gt.f32.partialorder %v591, 0.0
  %vm772 = vcmp.gt.f32.partialorder %v702, 0.0
  %vm773 = vcmp.gt.f32.partialorder %v704, 0.0
  %vm774 = vcmp.gt.f32.partialorder %v593, 0.0
  %vm775 = vcmp.gt.f32.partialorder %v595, 0.0
  %vm776 = vcmp.gt.f32.partialorder %v706, 0.0
  %vm777 = vcmp.gt.f32.partialorder %v708, 0.0
  %vm778 = vcmp.gt.f32.partialorder %v599, 0.0
  %vm779 = vcmp.gt.f32.partialorder %v601, 0.0
  %vm780 = vcmp.gt.f32.partialorder %v712, 0.0
  %vm781 = vcmp.gt.f32.partialorder %v714, 0.0
  %vm782 = vcmp.gt.f32.partialorder %v603, 0.0
  %vm783 = vcmp.gt.f32.partialorder %v605, 0.0
  %vm784 = vcmp.gt.f32.partialorder %v716, 0.0
  %vm785 = vcmp.gt.f32.partialorder %v718, 0.0
  %vm786 = vcmp.gt.f32.partialorder %v609, 0.0
  %vm787 = vcmp.gt.f32.partialorder %v611, 0.0
  %vm788 = vcmp.gt.f32.partialorder %v722, 0.0
  %vm789 = vcmp.gt.f32.partialorder %v724, 0.0
  %vm790 = vcmp.gt.f32.partialorder %v613, 0.0
  %vm791 = vcmp.gt.f32.partialorder %v615, 0.0
  %vm792 = vcmp.gt.f32.partialorder %v726, 0.0
  %vm793 = vcmp.gt.f32.partialorder %v728, 0.0
  %v794 = vmul.f32 %v539, 0.2
  %v795 = vmul.f32 %v541, 0.2
  %v796 = vmul.f32 %v652, 0.2
  %v797 = vmul.f32 %v654, 0.2
  %v798 = vmul.f32 %v543, 0.2
  %v799 = vmul.f32 %v545, 0.2
  %v800 = vmul.f32 %v656, 0.2
  %v801 = vmul.f32 %v658, 0.2
  %v802 = vmul.f32 %v549, 0.2
  %v803 = vmul.f32 %v551, 0.2
  %v804 = vmul.f32 %v662, 0.2
  %v805 = vmul.f32 %v664, 0.2
  %v806 = vmul.f32 %v553, 0.2
  %v807 = vmul.f32 %v555, 0.2
  %v808 = vmul.f32 %v666, 0.2
  %v809 = vmul.f32 %v668, 0.2
  %v810 = vmul.f32 %v559, 0.2
  %v811 = vmul.f32 %v561, 0.2
  %v812 = vmul.f32 %v672, 0.2
  %v813 = vmul.f32 %v674, 0.2
  %v814 = vmul.f32 %v563, 0.2
  %v815 = vmul.f32 %v565, 0.2
  %v816 = vmul.f32 %v676, 0.2
  %v817 = vmul.f32 %v678, 0.2
  %v818 = vmul.f32 %v569, 0.2
  %v819 = vmul.f32 %v571, 0.2
  %v820 = vmul.f32 %v682, 0.2
  %v821 = vmul.f32 %v684, 0.2
  %v822 = vmul.f32 %v573, 0.2
  %v823 = vmul.f32 %v575, 0.2
  %v824 = vmul.f32 %v686, 0.2
  %v825 = vmul.f32 %v688, 0.2
  %v826 = vmul.f32 %v579, 0.2
  %v827 = vmul.f32 %v581, 0.2
  %v828 = vmul.f32 %v692, 0.2
  %v829 = vmul.f32 %v694, 0.2
  %v830 = vmul.f32 %v583, 0.2
  %v831 = vmul.f32 %v585, 0.2
  %v832 = vmul.f32 %v696, 0.2
  %v833 = vmul.f32 %v698, 0.2
  %v834 = vmul.f32 %v589, 0.2
  %v835 = vmul.f32 %v591, 0.2
  %v836 = vmul.f32 %v702, 0.2
  %v837 = vmul.f32 %v704, 0.2
  %v838 = vmul.f32 %v593, 0.2
  %v839 = vmul.f32 %v595, 0.2
  %v840 = vmul.f32 %v706, 0.2
  %v841 = vmul.f32 %v708, 0.2
  %v842 = vmul.f32 %v599, 0.2
  %v843 = vmul.f32 %v601, 0.2
  %v844 = vmul.f32 %v712, 0.2
  %v845 = vmul.f32 %v714, 0.2
  %v846 = vmul.f32 %v603, 0.2
  %v847 = vmul.f32 %v605, 0.2
  %v848 = vmul.f32 %v716, 0.2
  %v849 = vmul.f32 %v718, 0.2
  %v850 = vmul.f32 %v609, 0.2
  %v851 = vmul.f32 %v611, 0.2
  %v852 = vmul.f32 %v722, 0.2
  %v853 = vmul.f32 %v724, 0.2
  %v854 = vmul.f32 %v613, 0.2
  %v855 = vmul.f32 %v615, 0.2
  %v856 = vmul.f32 %v726, 0.2
  %v857 = vmul.f32 %v728, 0.2
  %v858 = vsel %vm730, %v539, %v794
  %v859 = vsel %vm731, %v541, %v795
  %v860 = vsel %vm732, %v652, %v796
  %v861 = vsel %vm733, %v654, %v797
  %v862 = vsel %vm734, %v543, %v798
  %v863 = vsel %vm735, %v545, %v799
  %v864 = vsel %vm736, %v656, %v800
  %v865 = vsel %vm737, %v658, %v801
  %v866 = vsel %vm738, %v549, %v802
  %v867 = vsel %vm739, %v551, %v803
  %v868 = vsel %vm740, %v662, %v804
  %v869 = vsel %vm741, %v664, %v805
  %v870 = vsel %vm742, %v553, %v806
  %v871 = vsel %vm743, %v555, %v807
  %v872 = vsel %vm744, %v666, %v808
  %v873 = vsel %vm745, %v668, %v809
  %v874 = vsel %vm746, %v559, %v810
  %v875 = vsel %vm747, %v561, %v811
  %v876 = vsel %vm748, %v672, %v812
  %v877 = vsel %vm749, %v674, %v813
  %v878 = vsel %vm750, %v563, %v814
  %v879 = vsel %vm751, %v565, %v815
  %v880 = vsel %vm752, %v676, %v816
  %v881 = vsel %vm753, %v678, %v817
  %v882 = vsel %vm754, %v569, %v818
  %v883 = vsel %vm755, %v571, %v819
  %v884 = vsel %vm756, %v682, %v820
  %v885 = vsel %vm757, %v684, %v821
  %v886 = vsel %vm758, %v573, %v822
  %v887 = vsel %vm759, %v575, %v823
  %v888 = vsel %vm760, %v686, %v824
  %v889 = vsel %vm761, %v688, %v825
  %v890 = vsel %vm762, %v579, %v826
  %v891 = vsel %vm763, %v581, %v827
  %v892 = vsel %vm764, %v692, %v828
  %v893 = vsel %vm765, %v694, %v829
  %v894 = vsel %vm766, %v583, %v830
  %v895 = vsel %vm767, %v585, %v831
  %v896 = vsel %vm768, %v696, %v832
  %v897 = vsel %vm769, %v698, %v833
  %v898 = vsel %vm770, %v589, %v834
  %v899 = vsel %vm771, %v591, %v835
  %v900 = vsel %vm772, %v702, %v836
  %v901 = vsel %vm773, %v704, %v837
  %v902 = vsel %vm774, %v593, %v838
  %v903 = vsel %vm775, %v595, %v839
  %v904 = vsel %vm776, %v706, %v840
  %v905 = vsel %vm777, %v708, %v841
  %v906 = vsel %vm778, %v599, %v842
  %v907 = vsel %vm779, %v601, %v843
  %v908 = vsel %vm780, %v712, %v844
  %v909 = vsel %vm781, %v714, %v845
  %v910 = vsel %vm782, %v603, %v846
  %v911 = vsel %vm783, %v605, %v847
  %v912 = vsel %vm784, %v716, %v848
  %v913 = vsel %vm785, %v718, %v849
  %v914 = vsel %vm786, %v609, %v850
  %v915 = vsel %vm787, %v611, %v851
  %v916 = vsel %vm788, %v722, %v852
  %v917 = vsel %vm789, %v724, %v853
  %v918 = vsel %vm790, %v613, %v854
  %v919 = vsel %vm791, %v615, %v855
  %v920 = vsel %vm792, %v726, %v856
  %v921 = vsel %vm793, %v728, %v857
  %v922 = vpack.c.bf16 %v862, %v858
  %v923 = vpack.c.bf16 %v863, %v859
  %v924 = vpack.c.bf16 %v864, %v860
  %v925 = vpack.c.bf16 %v865, %v861
  %v926 = vpack.c.bf16 %v870, %v866
  %v927 = vpack.c.bf16 %v871, %v867
  %v928 = vpack.c.bf16 %v872, %v868
  %v929 = vpack.c.bf16 %v873, %v869
  %v930 = vpack.c.bf16 %v878, %v874
  %v931 = vpack.c.bf16 %v879, %v875
  %v932 = vpack.c.bf16 %v880, %v876
  %v933 = vpack.c.bf16 %v881, %v877
  %v934 = vpack.c.bf16 %v886, %v882
  %v935 = vpack.c.bf16 %v887, %v883
  %v936 = vpack.c.bf16 %v888, %v884
  %v937 = vpack.c.bf16 %v889, %v885
  %v938 = vpack.c.bf16 %v894, %v890
  %v939 = vpack.c.bf16 %v895, %v891
  %v940 = vpack.c.bf16 %v896, %v892
  %v941 = vpack.c.bf16 %v897, %v893
  %v942 = vpack.c.bf16 %v902, %v898
  %v943 = vpack.c.bf16 %v903, %v899
  %v944 = vpack.c.bf16 %v904, %v900
  %v945 = vpack.c.bf16 %v905, %v901
  %v946 = vpack.c.bf16 %v910, %v906
  %v947 = vpack.c.bf16 %v911, %v907
  %v948 = vpack.c.bf16 %v912, %v908
  %v949 = vpack.c.bf16 %v913, %v909
  %v950 = vpack.c.bf16 %v918, %v914
  %v951 = vpack.c.bf16 %v919, %v915
  %v952 = vpack.c.bf16 %v920, %v916
  %v953 = vpack.c.bf16 %v921, %v917
  %v954 = vld [vmem:[%s2] sm:$0xf]
  %v955 = vld [vmem:[%s2 + $0x4] sm:$0xf]
  %v956 = vld [vmem:[%s2 + $0x8] sm:$0xf]
  %v957 = vld [vmem:[%s2 + $0xc] sm:$0xf]
  %v958 = vld [vmem:[%s2 + $0x10] sm:$0xf]
  %v959 = vld [vmem:[%s2 + $0x14] sm:$0xf]
  %v960 = vld [vmem:[%s2 + $0x18] sm:$0xf]
  %v961 = vld [vmem:[%s2 + $0x1c] sm:$0xf]
  %v962 = vld [vmem:[%s2 + $0x20] sm:$0xf]
  %v963 = vld [vmem:[%s2 + $0x24] sm:$0xf]
  %v964 = vld [vmem:[%s2 + $0x28] sm:$0xf]
  %v965 = vld [vmem:[%s2 + $0x2c] sm:$0xf]
  %v966 = vld [vmem:[%s2 + $0x30] sm:$0xf]
  %v967 = vld [vmem:[%s2 + $0x34] sm:$0xf]
  %v968 = vld [vmem:[%s2 + $0x38] sm:$0xf]
  %v969 = vld [vmem:[%s2 + $0x3c] sm:$0xf]
  %v970 = vld [vmem:[%s2 + $0x40] sm:$0xf]
  %v971 = vld [vmem:[%s2 + $0x44] sm:$0xf]
  %v972 = vld [vmem:[%s2 + $0x48] sm:$0xf]
  %v973 = vld [vmem:[%s2 + $0x4c] sm:$0xf]
  %v974 = vld [vmem:[%s2 + $0x50] sm:$0xf]
  %v975 = vld [vmem:[%s2 + $0x54] sm:$0xf]
  %v976 = vld [vmem:[%s2 + $0x58] sm:$0xf]
  %v977 = vld [vmem:[%s2 + $0x5c] sm:$0xf]
  %v978 = vld [vmem:[%s2 + $0x60] sm:$0xf]
  %v979 = vld [vmem:[%s2 + $0x64] sm:$0xf]
  %v980 = vld [vmem:[%s2 + $0x68] sm:$0xf]
  %v981 = vld [vmem:[%s2 + $0x6c] sm:$0xf]
  %v982 = vld [vmem:[%s2 + $0x70] sm:$0xf]
  %v983 = vld [vmem:[%s2 + $0x74] sm:$0xf]
  %v984 = vld [vmem:[%s2 + $0x78] sm:$0xf]
  %v985 = vld [vmem:[%s2 + $0x7c] sm:$0xf]
  %v986 = vld [vmem:[%s2 + $0x80] sm:$0xf]
  %v987 = vld [vmem:[%s2 + $0x84] sm:$0xf]
  %v988 = vld [vmem:[%s2 + $0x88] sm:$0xf]
  %v989 = vld [vmem:[%s2 + $0x8c] sm:$0xf]
  %v990 = vld [vmem:[%s2 + $0x90] sm:$0xf]
  %v991 = vld [vmem:[%s2 + $0x94] sm:$0xf]
  %v992 = vld [vmem:[%s2 + $0x98] sm:$0xf]
  %v993 = vld [vmem:[%s2 + $0x9c] sm:$0xf]
  %v994 = vld [vmem:[%s2 + $0xa0] sm:$0xf]
  %v995 = vld [vmem:[%s2 + $0xa4] sm:$0xf]
  %v996 = vld [vmem:[%s2 + $0xa8] sm:$0xf]
  %v997 = vld [vmem:[%s2 + $0xac] sm:$0xf]
  %v998 = vld [vmem:[%s2 + $0xb0] sm:$0xf]
  %v999 = vld [vmem:[%s2 + $0xb4] sm:$0xf]
  %v1000 = vld [vmem:[%s2 + $0xb8] sm:$0xf]
  %v1001 = vld [vmem:[%s2 + $0xbc] sm:$0xf]
  %v1002 = vld [vmem:[%s2 + $0xc0] sm:$0xf]
  %v1003 = vld [vmem:[%s2 + $0xc4] sm:$0xf]
  %v1004 = vld [vmem:[%s2 + $0xc8] sm:$0xf]
  %v1005 = vld [vmem:[%s2 + $0xcc] sm:$0xf]
  %v1006 = vld [vmem:[%s2 + $0xd0] sm:$0xf]
  %v1007 = vld [vmem:[%s2 + $0xd4] sm:$0xf]
  %v1008 = vld [vmem:[%s2 + $0xd8] sm:$0xf]
  %v1009 = vld [vmem:[%s2 + $0xdc] sm:$0xf]
  %v1010 = vld [vmem:[%s2 + $0xe0] sm:$0xf]
  %v1011 = vld [vmem:[%s2 + $0xe4] sm:$0xf]
  %v1012 = vld [vmem:[%s2 + $0xe8] sm:$0xf]
  %v1013 = vld [vmem:[%s2 + $0xec] sm:$0xf]
  %v1014 = vld [vmem:[%s2 + $0xf0] sm:$0xf]
  %v1015 = vld [vmem:[%s2 + $0xf4] sm:$0xf]
  %v1016 = vld [vmem:[%s2 + $0xf8] sm:$0xf]
  %v1017 = vld [vmem:[%s2 + $0xfc] sm:$0xf]
  %v1082 = vunpack.c.l.b16 %v954
  %v1083 = vunpack.c.l.b16 %v955
  %v1084 = vunpack.c.l.b16 %v956
  %v1085 = vunpack.c.l.b16 %v957
  %v1086 = vunpack.c.l.b16 %v958
  %v1087 = vunpack.c.l.b16 %v959
  %v1088 = vunpack.c.l.b16 %v960
  %v1089 = vunpack.c.l.b16 %v961
  %v1090 = vunpack.c.l.b16 %v962
  %v1091 = vunpack.c.l.b16 %v963
  %v1092 = vunpack.c.l.b16 %v964
  %v1093 = vunpack.c.l.b16 %v965
  %v1094 = vunpack.c.l.b16 %v966
  %v1095 = vunpack.c.l.b16 %v967
  %v1096 = vunpack.c.l.b16 %v968
  %v1097 = vunpack.c.l.b16 %v969
  %v1098 = vunpack.c.l.b16 %v970
  %v1099 = vunpack.c.l.b16 %v971
  %v1100 = vunpack.c.l.b16 %v972
  %v1101 = vunpack.c.l.b16 %v973
  %v1102 = vunpack.c.l.b16 %v974
  %v1103 = vunpack.c.l.b16 %v975
  %v1104 = vunpack.c.l.b16 %v976
  %v1105 = vunpack.c.l.b16 %v977
  %v1106 = vunpack.c.l.b16 %v978
  %v1107 = vunpack.c.l.b16 %v979
  %v1108 = vunpack.c.l.b16 %v980
  %v1109 = vunpack.c.l.b16 %v981
  %v1110 = vunpack.c.l.b16 %v982
  %v1111 = vunpack.c.l.b16 %v983
  %v1112 = vunpack.c.l.b16 %v984
  %v1113 = vunpack.c.l.b16 %v985
  %v1114 = vunpack.c.l.b16 %v986
  %v1115 = vunpack.c.l.b16 %v987
  %v1116 = vunpack.c.l.b16 %v988
  %v1117 = vunpack.c.l.b16 %v989
  %v1118 = vunpack.c.l.b16 %v990
  %v1119 = vunpack.c.l.b16 %v991
  %v1120 = vunpack.c.l.b16 %v992
  %v1121 = vunpack.c.l.b16 %v993
  %v1122 = vunpack.c.l.b16 %v994
  %v1123 = vunpack.c.l.b16 %v995
  %v1124 = vunpack.c.l.b16 %v996
  %v1125 = vunpack.c.l.b16 %v997
  %v1126 = vunpack.c.l.b16 %v998
  %v1127 = vunpack.c.l.b16 %v999
  %v1128 = vunpack.c.l.b16 %v1000
  %v1129 = vunpack.c.l.b16 %v1001
  %v1130 = vunpack.c.l.b16 %v1002
  %v1131 = vunpack.c.l.b16 %v1003
  %v1132 = vunpack.c.l.b16 %v1004
  %v1133 = vunpack.c.l.b16 %v1005
  %v1134 = vunpack.c.l.b16 %v1006
  %v1135 = vunpack.c.l.b16 %v1007
  %v1136 = vunpack.c.l.b16 %v1008
  %v1137 = vunpack.c.l.b16 %v1009
  %v1138 = vunpack.c.l.b16 %v1010
  %v1139 = vunpack.c.l.b16 %v1011
  %v1140 = vunpack.c.l.b16 %v1012
  %v1141 = vunpack.c.l.b16 %v1013
  %v1142 = vunpack.c.l.b16 %v1014
  %v1143 = vunpack.c.l.b16 %v1015
  %v1144 = vunpack.c.l.b16 %v1016
  %v1145 = vunpack.c.l.b16 %v1017
  %v1146 = vpack.c.b16 %v1083, %v1082
  %v1147 = vpack.c.b16 %v1085, %v1084
  %v1148 = vpack.c.b16 %v1087, %v1086
  %v1149 = vpack.c.b16 %v1089, %v1088
  %v1150 = vpack.c.b16 %v1091, %v1090
  %v1151 = vpack.c.b16 %v1093, %v1092
  %v1152 = vpack.c.b16 %v1095, %v1094
  %v1153 = vpack.c.b16 %v1097, %v1096
  %v1154 = vpack.c.b16 %v1099, %v1098
  %v1155 = vpack.c.b16 %v1101, %v1100
  %v1156 = vpack.c.b16 %v1103, %v1102
  %v1157 = vpack.c.b16 %v1105, %v1104
  %v1158 = vpack.c.b16 %v1107, %v1106
  %v1159 = vpack.c.b16 %v1109, %v1108
  %v1160 = vpack.c.b16 %v1111, %v1110
  %v1161 = vpack.c.b16 %v1113, %v1112
  %v1162 = vpack.c.b16 %v1115, %v1114
  %v1163 = vpack.c.b16 %v1117, %v1116
  %v1164 = vpack.c.b16 %v1119, %v1118
  %v1165 = vpack.c.b16 %v1121, %v1120
  %v1166 = vpack.c.b16 %v1123, %v1122
  %v1167 = vpack.c.b16 %v1125, %v1124
  %v1168 = vpack.c.b16 %v1127, %v1126
  %v1169 = vpack.c.b16 %v1129, %v1128
  %v1170 = vpack.c.b16 %v1131, %v1130
  %v1171 = vpack.c.b16 %v1133, %v1132
  %v1172 = vpack.c.b16 %v1135, %v1134
  %v1173 = vpack.c.b16 %v1137, %v1136
  %v1174 = vpack.c.b16 %v1139, %v1138
  %v1175 = vpack.c.b16 %v1141, %v1140
  %v1176 = vpack.c.b16 %v1143, %v1142
  %v1177 = vpack.c.b16 %v1145, %v1144
  %1210 = vmatprep.subr.bf16.mxu0 0
  %1211 = vmatpush1.bf16.msra.mxu0 %v1146
  %1212 = vmatprep.subr.bf16.mxu0 0
  %1213 = vmatpush1.bf16.msra.mxu0 %v1147
  %1214 = vmatprep.subr.bf16.mxu0 0
  %1215 = vmatpush1.bf16.msra.mxu0 %v1148
  %1216 = vmatprep.subr.bf16.mxu0 0
  %1217 = vmatpush1.bf16.msra.mxu0 %v1149
  %1218 = vmatprep.subr.bf16.mxu0 0
  %1219 = vmatpush1.bf16.msra.mxu0 %v1150
  %1220 = vmatprep.subr.bf16.mxu0 0
  %1221 = vmatpush1.bf16.msra.mxu0 %v1151
  %1222 = vmatprep.subr.bf16.mxu0 0
  %1223 = vmatpush1.bf16.msra.mxu0 %v1152
  %1224 = vmatprep.subr.bf16.mxu0 0
  %1225 = vmatpush1.bf16.msra.mxu0 %v1153
  %1226 = vmatprep.subr.bf16.mxu0 0
  %1227 = vmatpush1.bf16.msra.mxu0 %v1154
  %1228 = vmatprep.subr.bf16.mxu0 0
  %1229 = vmatpush1.bf16.msra.mxu0 %v1155
  %1230 = vmatprep.subr.bf16.mxu0 0
  %1231 = vmatpush1.bf16.msra.mxu0 %v1156
  %1232 = vmatprep.subr.bf16.mxu0 0
  %1233 = vmatpush1.bf16.msra.mxu0 %v1157
  %1234 = vmatprep.subr.bf16.mxu0 0
  %1235 = vmatpush1.bf16.msra.mxu0 %v1158
  %1236 = vmatprep.subr.bf16.mxu0 0
  %1237 = vmatpush1.bf16.msra.mxu0 %v1159
  %1238 = vmatprep.subr.bf16.mxu0 0
  %1239 = vmatpush1.bf16.msra.mxu0 %v1160
  %1240 = vmatprep.subr.bf16.mxu0 0
  %1241 = vmatpush1.bf16.msra.mxu0 %v1161
  %1242 = vmatprep.mubr.bf16.mxu0 %v923
  %1243 = vmatmul.mubr.bf16.gmra.mrb[0].mxu0 %v922
  %v1244 = vpop.f32.mrb[0].mxu0
  %v1245 = vadd.f32 0.0, %v1244
  %v1246 = vpop.f32.mrb[0].mxu0
  %v1247 = vpop.f32.mrb[0].mxu0
  %v1248 = vadd.f32 0.0, %v1247
  %v1249 = vpop.f32.mrb[0].mxu0
  %1250 = vmatprep.mubr.bf16.mxu0 %v927
  %1251 = vmatmul.mubr.bf16.gmra.mrb[0].mxu0 %v926
  %v1252 = vpop.f32.mrb[0].mxu0
  %v1253 = vadd.f32 0.0, %v1252
  %v1254 = vpop.f32.mrb[0].mxu0
  %v1255 = vpop.f32.mrb[0].mxu0
  %v1256 = vadd.f32 0.0, %v1255
  %v1257 = vpop.f32.mrb[0].mxu0
  %1258 = vmatprep.mubr.bf16.mxu0 %v931
  %1259 = vmatmul.mubr.bf16.gmra.mrb[0].mxu0 %v930
  %v1260 = vpop.f32.mrb[0].mxu0
  %v1261 = vadd.f32 0.0, %v1260
  %v1262 = vpop.f32.mrb[0].mxu0
  %v1263 = vpop.f32.mrb[0].mxu0
  %v1264 = vadd.f32 0.0, %v1263
  %v1265 = vpop.f32.mrb[0].mxu0
  %1266 = vmatprep.mubr.bf16.mxu0 %v935
  %1267 = vmatmul.mubr.bf16.gmra.mrb[0].mxu0 %v934
  %v1268 = vpop.f32.mrb[0].mxu0
  %v1269 = vadd.f32 0.0, %v1268
  %v1270 = vpop.f32.mrb[0].mxu0
  %v1271 = vpop.f32.mrb[0].mxu0
  %v1272 = vadd.f32 0.0, %v1271
  %v1273 = vpop.f32.mrb[0].mxu0
  %1274 = vmatprep.mubr.bf16.mxu0 %v939
  %1275 = vmatmul.mubr.bf16.gmra.mrb[0].mxu0 %v938
  %v1276 = vpop.f32.mrb[0].mxu0
  %v1277 = vadd.f32 0.0, %v1276
  %v1278 = vpop.f32.mrb[0].mxu0
  %v1279 = vpop.f32.mrb[0].mxu0
  %v1280 = vadd.f32 0.0, %v1279
  %v1281 = vpop.f32.mrb[0].mxu0
  %1282 = vmatprep.mubr.bf16.mxu0 %v943
  %1283 = vmatmul.mubr.bf16.gmra.mrb[0].mxu0 %v942
  %v1284 = vpop.f32.mrb[0].mxu0
  %v1285 = vadd.f32 0.0, %v1284
  %v1286 = vpop.f32.mrb[0].mxu0
  %v1287 = vpop.f32.mrb[0].mxu0
  %v1288 = vadd.f32 0.0, %v1287
  %v1289 = vpop.f32.mrb[0].mxu0
  %1290 = vmatprep.mubr.bf16.mxu0 %v947
  %1291 = vmatmul.mubr.bf16.gmra.mrb[0].mxu0 %v946
  %v1292 = vpop.f32.mrb[0].mxu0
  %v1293 = vadd.f32 0.0, %v1292
  %v1294 = vpop.f32.mrb[0].mxu0
  %v1295 = vpop.f32.mrb[0].mxu0
  %v1296 = vadd.f32 0.0, %v1295
  %v1297 = vpop.f32.mrb[0].mxu0
  %1298 = vmatprep.mubr.bf16.mxu0 %v951
  %1299 = vmatmul.mubr.bf16.gmra.mrb[0].mxu0 %v950
  %v1300 = vpop.f32.mrb[0].mxu0
  %v1301 = vadd.f32 0.0, %v1300
  %v1302 = vpop.f32.mrb[0].mxu0
  %v1303 = vpop.f32.mrb[0].mxu0
  %v1304 = vadd.f32 0.0, %v1303
  %v1305 = vpop.f32.mrb[0].mxu0
  %1306 = vdwg.mxu0
  %1307 = vmatprep.subr.bf16.mxu0 0
  %1308 = vmatpush1.bf16.msra.mxu0 %v1162
  %1309 = vmatprep.subr.bf16.mxu0 0
  %1310 = vmatpush1.bf16.msra.mxu0 %v1163
  %1311 = vmatprep.subr.bf16.mxu0 0
  %1312 = vmatpush1.bf16.msra.mxu0 %v1164
  %1313 = vmatprep.subr.bf16.mxu0 0
  %1314 = vmatpush1.bf16.msra.mxu0 %v1165
  %1315 = vmatprep.subr.bf16.mxu0 0
  %1316 = vmatpush1.bf16.msra.mxu0 %v1166
  %1317 = vmatprep.subr.bf16.mxu0 0
  %1318 = vmatpush1.bf16.msra.mxu0 %v1167
  %1319 = vmatprep.subr.bf16.mxu0 0
  %1320 = vmatpush1.bf16.msra.mxu0 %v1168
  %1321 = vmatprep.subr.bf16.mxu0 0
  %1322 = vmatpush1.bf16.msra.mxu0 %v1169
  %1323 = vmatprep.subr.bf16.mxu0 0
  %1324 = vmatpush1.bf16.msra.mxu0 %v1170
  %1325 = vmatprep.subr.bf16.mxu0 0
  %1326 = vmatpush1.bf16.msra.mxu0 %v1171
  %1327 = vmatprep.subr.bf16.mxu0 0
  %1328 = vmatpush1.bf16.msra.mxu0 %v1172
  %1329 = vmatprep.subr.bf16.mxu0 0
  %1330 = vmatpush1.bf16.msra.mxu0 %v1173
  %1331 = vmatprep.subr.bf16.mxu0 0
  %1332 = vmatpush1.bf16.msra.mxu0 %v1174
  %1333 = vmatprep.subr.bf16.mxu0 0
  %1334 = vmatpush1.bf16.msra.mxu0 %v1175
  %1335 = vmatprep.subr.bf16.mxu0 0
  %1336 = vmatpush1.bf16.msra.mxu0 %v1176
  %1337 = vmatprep.subr.bf16.mxu0 0
  %1338 = vmatpush1.bf16.msra.mxu0 %v1177
  %1339 = vmatprep.mubr.bf16.mxu0 %v925
  %1340 = vmatmul.mubr.bf16.gmra.mrb[0].mxu0 %v924
  %v1341 = vpop.f32.mrb[0].mxu0
  %v1342 = vadd.f32 %v1245, %v1341
  %v1343 = vpop.f32.mrb[0].mxu0
  %v1344 = vpop.f32.mrb[0].mxu0
  %v1345 = vadd.f32 %v1248, %v1344
  %v1346 = vpop.f32.mrb[0].mxu0
  %1347 = vmatprep.mubr.bf16.mxu0 %v929
  %1348 = vmatmul.mubr.bf16.gmra.mrb[0].mxu0 %v928
  %v1349 = vpop.f32.mrb[0].mxu0
  %v1350 = vadd.f32 %v1253, %v1349
  %v1351 = vpop.f32.mrb[0].mxu0
  %v1352 = vpop.f32.mrb[0].mxu0
  %v1353 = vadd.f32 %v1256, %v1352
  %v1354 = vpop.f32.mrb[0].mxu0
  %1355 = vmatprep.mubr.bf16.mxu0 %v933
  %1356 = vmatmul.mubr.bf16.gmra.mrb[0].mxu0 %v932
  %v1357 = vpop.f32.mrb[0].mxu0
  %v1358 = vadd.f32 %v1261, %v1357
  %v1359 = vpop.f32.mrb[0].mxu0
  %v1360 = vpop.f32.mrb[0].mxu0
  %v1361 = vadd.f32 %v1264, %v1360
  %v1362 = vpop.f32.mrb[0].mxu0
  %1363 = vmatprep.mubr.bf16.mxu0 %v937
  %1364 = vmatmul.mubr.bf16.gmra.mrb[0].mxu0 %v936
  %v1365 = vpop.f32.mrb[0].mxu0
  %v1366 = vadd.f32 %v1269, %v1365
  %v1367 = vpop.f32.mrb[0].mxu0
  %v1368 = vpop.f32.mrb[0].mxu0
  %v1369 = vadd.f32 %v1272, %v1368
  %v1370 = vpop.f32.mrb[0].mxu0
  %1371 = vmatprep.mubr.bf16.mxu0 %v941
  %1372 = vmatmul.mubr.bf16.gmra.mrb[0].mxu0 %v940
  %v1373 = vpop.f32.mrb[0].mxu0
  %v1374 = vadd.f32 %v1277, %v1373
  %v1375 = vpop.f32.mrb[0].mxu0
  %v1376 = vpop.f32.mrb[0].mxu0
  %v1377 = vadd.f32 %v1280, %v1376
  %v1378 = vpop.f32.mrb[0].mxu0
  %1379 = vmatprep.mubr.bf16.mxu0 %v945
  %1380 = vmatmul.mubr.bf16.gmra.mrb[0].mxu0 %v944
  %v1381 = vpop.f32.mrb[0].mxu0
  %v1382 = vadd.f32 %v1285, %v1381
  %v1383 = vpop.f32.mrb[0].mxu0
  %v1384 = vpop.f32.mrb[0].mxu0
  %v1385 = vadd.f32 %v1288, %v1384
  %v1386 = vpop.f32.mrb[0].mxu0
  %1387 = vmatprep.mubr.bf16.mxu0 %v949
  %1388 = vmatmul.mubr.bf16.gmra.mrb[0].mxu0 %v948
  %v1389 = vpop.f32.mrb[0].mxu0
  %v1390 = vadd.f32 %v1293, %v1389
  %v1391 = vpop.f32.mrb[0].mxu0
  %v1392 = vpop.f32.mrb[0].mxu0
  %v1393 = vadd.f32 %v1296, %v1392
  %v1394 = vpop.f32.mrb[0].mxu0
  %1395 = vmatprep.mubr.bf16.mxu0 %v953
  %1396 = vmatmul.mubr.bf16.gmra.mrb[0].mxu0 %v952
  %v1397 = vpop.f32.mrb[0].mxu0
  %v1398 = vadd.f32 %v1301, %v1397
  %v1399 = vpop.f32.mrb[0].mxu0
  %v1400 = vpop.f32.mrb[0].mxu0
  %v1401 = vadd.f32 %v1304, %v1400
  %v1402 = vpop.f32.mrb[0].mxu0
  %1403 = vdwg.mxu0
  %vm1404 = vcmask 523264
  %v1405 = vsel %vm1404, %v1342, 0.0
  %v1406 = vsel %vm1404, %v1345, 0.0
  %v1407 = vadd.f32 %v1405, %v1406
  %v1408 = vsel %vm1404, %v1350, 0.0
  %v1409 = vadd.f32 %v1407, %v1408
  %v1410 = vsel %vm1404, %v1353, 0.0
  %v1411 = vadd.f32 %v1409, %v1410
  %v1412 = vsel %vm1404, %v1358, 0.0
  %v1413 = vadd.f32 %v1411, %v1412
  %v1414 = vsel %vm1404, %v1361, 0.0
  %v1415 = vadd.f32 %v1413, %v1414
  %v1416 = vsel %vm1404, %v1366, 0.0
  %v1417 = vadd.f32 %v1415, %v1416
  %v1418 = vsel %vm1404, %v1369, 0.0
  %v1419 = vadd.f32 %v1417, %v1418
  %v1420 = vsel %vm1404, %v1374, 0.0
  %v1421 = vadd.f32 %v1419, %v1420
  %v1422 = vsel %vm1404, %v1377, 0.0
  %v1423 = vadd.f32 %v1421, %v1422
  %v1424 = vsel %vm1404, %v1382, 0.0
  %v1425 = vadd.f32 %v1423, %v1424
  %v1426 = vsel %vm1404, %v1385, 0.0
  %v1427 = vadd.f32 %v1425, %v1426
  %v1428 = vsel %vm1404, %v1390, 0.0
  %v1429 = vadd.f32 %v1427, %v1428
  %v1430 = vsel %vm1404, %v1393, 0.0
  %v1431 = vadd.f32 %v1429, %v1430
  %v1432 = vsel %vm1404, %v1398, 0.0
  %v1433 = vadd.f32 %v1431, %v1432
  %v1434 = vsel %vm1404, %v1401, 0.0
  %v1435 = vadd.f32 %v1433, %v1434
  %v1436 = vrot.slane %v1435, 4
  %v1437 = vadd.f32 %v1435, %v1436
  %v1438 = vrot.slane %v1437, 2
  %v1439 = vadd.f32 %v1437, %v1438
  %v1440 = vrot.slane %v1439, 1
  %v1441 = vadd.f32 %v1439, %v1440
  %v1442 = vrcp.pop 128.0
  %v1443 = vmul.f32 %v1441, %v1442
  %v1444 = vmul.f32 %v1342, %v1342
  %v1445 = vmul.f32 %v1345, %v1345
  %v1446 = vmul.f32 %v1350, %v1350
  %v1447 = vmul.f32 %v1353, %v1353
  %v1448 = vmul.f32 %v1358, %v1358
  %v1449 = vmul.f32 %v1361, %v1361
  %v1450 = vmul.f32 %v1366, %v1366
  %v1451 = vmul.f32 %v1369, %v1369
  %v1452 = vmul.f32 %v1374, %v1374
  %v1453 = vmul.f32 %v1377, %v1377
  %v1454 = vmul.f32 %v1382, %v1382
  %v1455 = vmul.f32 %v1385, %v1385
  %v1456 = vmul.f32 %v1390, %v1390
  %v1457 = vmul.f32 %v1393, %v1393
  %v1458 = vmul.f32 %v1398, %v1398
  %v1459 = vmul.f32 %v1401, %v1401
  %v1460 = vsel %vm1404, %v1444, 0.0
  %v1461 = vsel %vm1404, %v1445, 0.0
  %v1462 = vadd.f32 %v1460, %v1461
  %v1463 = vsel %vm1404, %v1446, 0.0
  %v1464 = vadd.f32 %v1462, %v1463
  %v1465 = vsel %vm1404, %v1447, 0.0
  %v1466 = vadd.f32 %v1464, %v1465
  %v1467 = vsel %vm1404, %v1448, 0.0
  %v1468 = vadd.f32 %v1466, %v1467
  %v1469 = vsel %vm1404, %v1449, 0.0
  %v1470 = vadd.f32 %v1468, %v1469
  %v1471 = vsel %vm1404, %v1450, 0.0
  %v1472 = vadd.f32 %v1470, %v1471
  %v1473 = vsel %vm1404, %v1451, 0.0
  %v1474 = vadd.f32 %v1472, %v1473
  %v1475 = vsel %vm1404, %v1452, 0.0
  %v1476 = vadd.f32 %v1474, %v1475
  %v1477 = vsel %vm1404, %v1453, 0.0
  %v1478 = vadd.f32 %v1476, %v1477
  %v1479 = vsel %vm1404, %v1454, 0.0
  %v1480 = vadd.f32 %v1478, %v1479
  %v1481 = vsel %vm1404, %v1455, 0.0
  %v1482 = vadd.f32 %v1480, %v1481
  %v1483 = vsel %vm1404, %v1456, 0.0
  %v1484 = vadd.f32 %v1482, %v1483
  %v1485 = vsel %vm1404, %v1457, 0.0
  %v1486 = vadd.f32 %v1484, %v1485
  %v1487 = vsel %vm1404, %v1458, 0.0
  %v1488 = vadd.f32 %v1486, %v1487
  %v1489 = vsel %vm1404, %v1459, 0.0
  %v1490 = vadd.f32 %v1488, %v1489
  %v1491 = vrot.slane %v1490, 4
  %v1492 = vadd.f32 %v1490, %v1491
  %v1493 = vrot.slane %v1492, 2
  %v1494 = vadd.f32 %v1492, %v1493
  %v1495 = vrot.slane %v1494, 1
  %v1496 = vadd.f32 %v1494, %v1495
  %v1497 = vmul.f32 %v1496, %v1442
  %v1498 = vmul.f32 %v1443, %v1443
  %v1499 = vsub.f32 %v1497, %v1498
  %v1500 = vld [vmem:[%s3] sm:$0x1]
  %v1501 = vadd.f32 %v1499, 1e-05
  %v1502 = vrsqrt.pop %v1501
  %v1503 = vmul.f32 %v1500, %v1502
  %v1504 = vld [vmem:[%s4] sm:$0x1]
  %v1505 = vmul.f32 %v1443, %v1503
  %v1506 = vsub.f32 %v1504, %v1505
  %v1508 = vlaneseq
  %v1509 = vshrl.u32 %v1508, 7
  %v1510 = vsub.s32 0, %v1509
  %v1511 = vrot.slane %v1503, %v1510
  %v1513 = vmul.f32 %v1342, %v1511
  %v1514 = vmul.f32 %v1345, %v1511
  %v1515 = vmul.f32 %v1350, %v1511
  %v1516 = vmul.f32 %v1353, %v1511
  %v1517 = vmul.f32 %v1358, %v1511
  %v1518 = vmul.f32 %v1361, %v1511
  %v1519 = vmul.f32 %v1366, %v1511
  %v1520 = vmul.f32 %v1369, %v1511
  %v1521 = vmul.f32 %v1374, %v1511
  %v1522 = vmul.f32 %v1377, %v1511
  %v1523 = vmul.f32 %v1382, %v1511
  %v1524 = vmul.f32 %v1385, %v1511
  %v1525 = vmul.f32 %v1390, %v1511
  %v1526 = vmul.f32 %v1393, %v1511
  %v1527 = vmul.f32 %v1398, %v1511
  %v1528 = vmul.f32 %v1401, %v1511
  %v1530 = vlaneseq
  %v1531 = vshrl.u32 %v1530, 7
  %v1532 = vsub.s32 0, %v1531
  %v1533 = vrot.slane %v1506, %v1532
  %v1535 = vadd.f32 %v1513, %v1533
  %v1536 = vadd.f32 %v1514, %v1533
  %v1537 = vadd.f32 %v1515, %v1533
  %v1538 = vadd.f32 %v1516, %v1533
  %v1539 = vadd.f32 %v1517, %v1533
  %v1540 = vadd.f32 %v1518, %v1533
  %v1541 = vadd.f32 %v1519, %v1533
  %v1542 = vadd.f32 %v1520, %v1533
  %v1543 = vadd.f32 %v1521, %v1533
  %v1544 = vadd.f32 %v1522, %v1533
  %v1545 = vadd.f32 %v1523, %v1533
  %v1546 = vadd.f32 %v1524, %v1533
  %v1547 = vadd.f32 %v1525, %v1533
  %v1548 = vadd.f32 %v1526, %v1533
  %v1549 = vadd.f32 %v1527, %v1533
  %v1550 = vadd.f32 %v1528, %v1533
  %vm1551 = vcmp.gt.f32.partialorder %v1535, 0.0
  %vm1552 = vcmp.gt.f32.partialorder %v1536, 0.0
  %vm1553 = vcmp.gt.f32.partialorder %v1537, 0.0
  %vm1554 = vcmp.gt.f32.partialorder %v1538, 0.0
  %vm1555 = vcmp.gt.f32.partialorder %v1539, 0.0
  %vm1556 = vcmp.gt.f32.partialorder %v1540, 0.0
  %vm1557 = vcmp.gt.f32.partialorder %v1541, 0.0
  %vm1558 = vcmp.gt.f32.partialorder %v1542, 0.0
  %vm1559 = vcmp.gt.f32.partialorder %v1543, 0.0
  %vm1560 = vcmp.gt.f32.partialorder %v1544, 0.0
  %vm1561 = vcmp.gt.f32.partialorder %v1545, 0.0
  %vm1562 = vcmp.gt.f32.partialorder %v1546, 0.0
  %vm1563 = vcmp.gt.f32.partialorder %v1547, 0.0
  %vm1564 = vcmp.gt.f32.partialorder %v1548, 0.0
  %vm1565 = vcmp.gt.f32.partialorder %v1549, 0.0
  %vm1566 = vcmp.gt.f32.partialorder %v1550, 0.0
  %v1567 = vmul.f32 %v1535, 0.1
  %v1568 = vmul.f32 %v1536, 0.1
  %v1569 = vmul.f32 %v1537, 0.1
  %v1570 = vmul.f32 %v1538, 0.1
  %v1571 = vmul.f32 %v1539, 0.1
  %v1572 = vmul.f32 %v1540, 0.1
  %v1573 = vmul.f32 %v1541, 0.1
  %v1574 = vmul.f32 %v1542, 0.1
  %v1575 = vmul.f32 %v1543, 0.1
  %v1576 = vmul.f32 %v1544, 0.1
  %v1577 = vmul.f32 %v1545, 0.1
  %v1578 = vmul.f32 %v1546, 0.1
  %v1579 = vmul.f32 %v1547, 0.1
  %v1580 = vmul.f32 %v1548, 0.1
  %v1581 = vmul.f32 %v1549, 0.1
  %v1582 = vmul.f32 %v1550, 0.1
  %v1583 = vsel %vm1551, %v1535, %v1567
  %v1584 = vsel %vm1552, %v1536, %v1568
  %v1585 = vsel %vm1553, %v1537, %v1569
  %v1586 = vsel %vm1554, %v1538, %v1570
  %v1587 = vsel %vm1555, %v1539, %v1571
  %v1588 = vsel %vm1556, %v1540, %v1572
  %v1589 = vsel %vm1557, %v1541, %v1573
  %v1590 = vsel %vm1558, %v1542, %v1574
  %v1591 = vsel %vm1559, %v1543, %v1575
  %v1592 = vsel %vm1560, %v1544, %v1576
  %v1593 = vsel %vm1561, %v1545, %v1577
  %v1594 = vsel %vm1562, %v1546, %v1578
  %v1595 = vsel %vm1563, %v1547, %v1579
  %v1596 = vsel %vm1564, %v1548, %v1580
  %v1597 = vsel %vm1565, %v1549, %v1581
  %v1598 = vsel %vm1566, %v1550, %v1582
  %v1599 = vld [vmem:[%s5] sm:$0xff]
  %v1600 = vld [vmem:[%s5 + $0x8] sm:$0xff]
  %v1601 = vmul.f32 %v1583, %v1599
  %v1602 = vmul.f32 %v1584, %v1600
  %v1603 = vmul.f32 %v1585, %v1599
  %v1604 = vmul.f32 %v1586, %v1600
  %v1605 = vmul.f32 %v1587, %v1599
  %v1606 = vmul.f32 %v1588, %v1600
  %v1607 = vmul.f32 %v1589, %v1599
  %v1608 = vmul.f32 %v1590, %v1600
  %v1609 = vmul.f32 %v1591, %v1599
  %v1610 = vmul.f32 %v1592, %v1600
  %v1611 = vmul.f32 %v1593, %v1599
  %v1612 = vmul.f32 %v1594, %v1600
  %v1613 = vmul.f32 %v1595, %v1599
  %v1614 = vmul.f32 %v1596, %v1600
  %v1615 = vmul.f32 %v1597, %v1599
  %v1616 = vmul.f32 %v1598, %v1600
  %v1617 = vsel %vm1404, %v1601, 0.0
  %1618 = vadd.xlane.f32.xlu0 %v1617
  %v1619 = vpop.xlane.xlu0 %1618
  %v1620 = vsel %vm1404, %v1602, 0.0
  %1621 = vadd.xlane.f32.xlu0 %v1620
  %v1622 = vpop.xlane.xlu0 %1621
  %v1623 = vsel %vm1404, %v1603, 0.0
  %1624 = vadd.xlane.f32.xlu0 %v1623
  %v1625 = vpop.xlane.xlu0 %1624
  %v1626 = vsel %vm1404, %v1604, 0.0
  %1627 = vadd.xlane.f32.xlu0 %v1626
  %v1628 = vpop.xlane.xlu0 %1627
  %v1629 = vsel %vm1404, %v1605, 0.0
  %1630 = vadd.xlane.f32.xlu0 %v1629
  %v1631 = vpop.xlane.xlu0 %1630
  %v1632 = vsel %vm1404, %v1606, 0.0
  %1633 = vadd.xlane.f32.xlu0 %v1632
  %v1634 = vpop.xlane.xlu0 %1633
  %v1635 = vsel %vm1404, %v1607, 0.0
  %1636 = vadd.xlane.f32.xlu0 %v1635
  %v1637 = vpop.xlane.xlu0 %1636
  %v1638 = vsel %vm1404, %v1608, 0.0
  %1639 = vadd.xlane.f32.xlu0 %v1638
  %v1640 = vpop.xlane.xlu0 %1639
  %v1641 = vsel %vm1404, %v1609, 0.0
  %1642 = vadd.xlane.f32.xlu0 %v1641
  %v1643 = vpop.xlane.xlu0 %1642
  %v1644 = vsel %vm1404, %v1610, 0.0
  %1645 = vadd.xlane.f32.xlu0 %v1644
  %v1646 = vpop.xlane.xlu0 %1645
  %v1647 = vsel %vm1404, %v1611, 0.0
  %1648 = vadd.xlane.f32.xlu0 %v1647
  %v1649 = vpop.xlane.xlu0 %1648
  %v1650 = vsel %vm1404, %v1612, 0.0
  %1651 = vadd.xlane.f32.xlu0 %v1650
  %v1652 = vpop.xlane.xlu0 %1651
  %v1653 = vsel %vm1404, %v1613, 0.0
  %1654 = vadd.xlane.f32.xlu0 %v1653
  %v1655 = vpop.xlane.xlu0 %1654
  %v1656 = vsel %vm1404, %v1614, 0.0
  %1657 = vadd.xlane.f32.xlu0 %v1656
  %v1658 = vpop.xlane.xlu0 %1657
  %v1659 = vsel %vm1404, %v1615, 0.0
  %1660 = vadd.xlane.f32.xlu0 %v1659
  %v1661 = vpop.xlane.xlu0 %1660
  %v1662 = vsel %vm1404, %v1616, 0.0
  %1663 = vadd.xlane.f32.xlu0 %v1662
  %v1664 = vpop.xlane.xlu0 %1663
  %v1681 = vlaneseq
  %v1682 = vand.u32 %v1681, 127
  %v1683 = vlaneseq
  %v1684 = vshrl.u32 %v1683, 7
  %v1685 = vsub.s32 %v1682, %v1684
  %v1686 = vrot.slane %v1619, %v1685
  %v1687 = vadd.s32 %v1682, 4294967288
  %v1688 = vlaneseq
  %v1689 = vshrl.u32 %v1688, 7
  %v1690 = vsub.s32 %v1687, %v1689
  %v1691 = vrot.slane %v1622, %v1690
  %vm1692 = vcmask 130112
  %v1693 = vsel %vm1692, %v1691, %v1686
  %v1694 = vlaneseq
  %v1695 = vshrl.u32 %v1694, 7
  %v1696 = vsub.s32 %v1682, %v1695
  %v1697 = vrot.slane %v1625, %v1696
  %v1698 = vlaneseq
  %v1699 = vshrl.u32 %v1698, 7
  %v1700 = vsub.s32 %v1687, %v1699
  %v1701 = vrot.slane %v1628, %v1700
  %v1702 = vsel %vm1692, %v1701, %v1697
  %v1703 = vlaneseq
  %v1704 = vshrl.u32 %v1703, 7
  %v1705 = vsub.s32 %v1682, %v1704
  %v1706 = vrot.slane %v1631, %v1705
  %v1707 = vlaneseq
  %v1708 = vshrl.u32 %v1707, 7
  %v1709 = vsub.s32 %v1687, %v1708
  %v1710 = vrot.slane %v1634, %v1709
  %v1711 = vsel %vm1692, %v1710, %v1706
  %v1712 = vlaneseq
  %v1713 = vshrl.u32 %v1712, 7
  %v1714 = vsub.s32 %v1682, %v1713
  %v1715 = vrot.slane %v1637, %v1714
  %v1716 = vlaneseq
  %v1717 = vshrl.u32 %v1716, 7
  %v1718 = vsub.s32 %v1687, %v1717
  %v1719 = vrot.slane %v1640, %v1718
  %v1720 = vsel %vm1692, %v1719, %v1715
  %v1721 = vlaneseq
  %v1722 = vshrl.u32 %v1721, 7
  %v1723 = vsub.s32 %v1682, %v1722
  %v1724 = vrot.slane %v1643, %v1723
  %v1725 = vlaneseq
  %v1726 = vshrl.u32 %v1725, 7
  %v1727 = vsub.s32 %v1687, %v1726
  %v1728 = vrot.slane %v1646, %v1727
  %v1729 = vsel %vm1692, %v1728, %v1724
  %v1730 = vlaneseq
  %v1731 = vshrl.u32 %v1730, 7
  %v1732 = vsub.s32 %v1682, %v1731
  %v1733 = vrot.slane %v1649, %v1732
  %v1734 = vlaneseq
  %v1735 = vshrl.u32 %v1734, 7
  %v1736 = vsub.s32 %v1687, %v1735
  %v1737 = vrot.slane %v1652, %v1736
  %v1738 = vsel %vm1692, %v1737, %v1733
  %v1739 = vlaneseq
  %v1740 = vshrl.u32 %v1739, 7
  %v1741 = vsub.s32 %v1682, %v1740
  %v1742 = vrot.slane %v1655, %v1741
  %v1743 = vlaneseq
  %v1744 = vshrl.u32 %v1743, 7
  %v1745 = vsub.s32 %v1687, %v1744
  %v1746 = vrot.slane %v1658, %v1745
  %v1747 = vsel %vm1692, %v1746, %v1742
  %v1748 = vlaneseq
  %v1749 = vshrl.u32 %v1748, 7
  %v1750 = vsub.s32 %v1682, %v1749
  %v1751 = vrot.slane %v1661, %v1750
  %v1752 = vlaneseq
  %v1753 = vshrl.u32 %v1752, 7
  %v1754 = vsub.s32 %v1687, %v1753
  %v1755 = vrot.slane %v1664, %v1754
  %v1756 = vsel %vm1692, %v1755, %v1751
  %vm1757 = vcmask 1041409
  %v1758 = vsel %vm1757, %v1702, %v1693
  %vm1759 = vcmask 1042434
  %v1760 = vsel %vm1759, %v1711, %v1758
  %vm1761 = vcmask 1043459
  %v1762 = vsel %vm1761, %v1720, %v1760
  %vm1763 = vcmask 1044484
  %v1764 = vsel %vm1763, %v1729, %v1762
  %vm1765 = vcmask 1045509
  %v1766 = vsel %vm1765, %v1738, %v1764
  %vm1767 = vcmask 1046534
  %v1768 = vsel %vm1767, %v1747, %v1766
  %vm1769 = vcmask 1047559
  %v1770 = vsel %vm1769, %v1756, %v1768
  %vm1772 = vcmask 130048
  %v1773 = vsel %vm1772, %v1770, 0.0
  %1774 = vadd.xlane.f32.xlu0 %v1773
  %v1775 = vpop.xlane.xlu0 %1774
  %v1776 = vxor.u32 %v1775, 2147483648
  %v1777 = vmul.f32 %v1776, 1.442695
  %v1778 = vpow.pop %v1777
  %v1779 = vadd.f32 %v1778, 1.0
  %v1780 = vrcp.pop %v1779
  %v1781 = vmul.f32 1.0, %v1780
  %vm1782 = vcmask 7168
  %1783 = vst.msk [vmem:[%s6] sm:$0xff] %vm1782, %v1781
  // Predicated region
  $region26: #{_dcgan_netD_forward_impl.1} parent=0 // pred_check
    _
  $region27: #{_dcgan_netD_forward_impl.1} parent=0 // pred_check_branch
    %1785 = sbr.rel (0) target = $region29
  $region28: #{_dcgan_netD_forward_impl.1} parent=0 // pred_region
    _
  $region29: #{_dcgan_netD_forward_impl.1} parent=0 // pred_fallthru
    _
  // Predicated region
  $region30: #{_dcgan_netD_forward_impl.1} parent=0 // pred_check
    _
  $region31: #{_dcgan_netD_forward_impl.1} parent=0 // pred_check_branch
    %1787 = sbr.rel (0) target = $region33
  $region32: #{_dcgan_netD_forward_impl.1} parent=0 // pred_region
    _
  $region33: #{_dcgan_netD_forward_impl.1} parent=0 // pred_fallthru
    _

</llo_original>
